<compile_context>
chip_gen: v7x
topology: tpu7x:2x2x1
jax: 0.10.0
libtpu: 0.0.40
codegen_flags: <defaults>
</compile_context>

<pallas_src>
import jax
import jax.numpy as jnp
from jax.experimental import pallas as pl
from jax.experimental.pallas import tpu as pltpu


NUM_LAYERS = 2  # kernel unrolls exactly two LSTM layers (matches the module)


# ----------------------------- fused kernel ---------------------------------


def decoder_step_kernel(tok_ref,                       # SMEM [Bp] int32
                        emb_ref,                       # VMEM [Vin, E] f32
                        h_in_ref, c_in_ref,            # VMEM [L, Bp, H] f32
                        wih0_ref, whh0_ref, b0_ref,    # layer 0 weights
                        wih1_ref, whh1_ref, b1_ref,    # layer 1 weights
                        fcw_ref, fcb_ref,              # fc weights (V padded)
                        pred_ref,                      # VMEM [Bp, Vp] f32
                        h_out_ref, c_out_ref,          # VMEM [L, Bp, H] f32
                        x_scratch):                    # VMEM [Bp, E] f32
    Bp = h_in_ref.shape[1]
    H = h_in_ref.shape[2]

    # ---- embedding gather: tokens from SMEM, table resident in VMEM --------
    for b in range(Bp):  # Bp == 8: fully unrolled static loop
        tok = tok_ref[b]
        x_scratch[pl.ds(b, 1), :] = emb_ref[pl.ds(tok, 1), :]
    # Dropout on the embedding is identity at inference time.
    # TODO(synk): training-mode dropout (Bernoulli mask) not implemented.

    def lstm_cell(x_f32, h_prev, c_prev, wih, whh, bias):
        # MXU matmuls in bf16, f32 accumulation; gate math stays f32.
        gates = (
            jnp.dot(x_f32.astype(jnp.bfloat16), wih,
                    preferred_element_type=jnp.float32)
            + jnp.dot(h_prev.astype(jnp.bfloat16), whh,
                      preferred_element_type=jnp.float32)
            + bias
        )
        # PyTorch gate order: i, f, g, o.  H == 128 so every slice below is a
        # full lane-aligned 128-lane block -> plain full-vreg VPU/EUP ops.
        if_part = jax.nn.sigmoid(gates[:, 0:2 * H])    # i and f in one pass
        i_g = if_part[:, 0:H]
        f_g = if_part[:, H:2 * H]
        g_g = jnp.tanh(gates[:, 2 * H:3 * H])
        o_g = jax.nn.sigmoid(gates[:, 3 * H:4 * H])
        c_new = f_g * c_prev + i_g * g_g
        h_new = o_g * jnp.tanh(c_new)
        return h_new, c_new

    # ---- layer 0 ------------------------------------------------------------
    h0, c0 = lstm_cell(x_scratch[...], h_in_ref[0], c_in_ref[0],
                       wih0_ref[...], whh0_ref[...], b0_ref[...])
    h_out_ref[0] = h0
    c_out_ref[0] = c0

    # ---- layer 1 (inter-layer dropout is identity at inference) ------------
    h1, c1 = lstm_cell(h0, h_in_ref[1], c_in_ref[1],
                       wih1_ref[...], whh1_ref[...], b1_ref[...])
    h_out_ref[1] = h1
    c_out_ref[1] = c1

    # ---- fc projection: lane-dense padded-vocab output ----------------------
    pred_ref[...] = (
        jnp.dot(h1.astype(jnp.bfloat16), fcw_ref[...],
                preferred_element_type=jnp.float32)
        + fcb_ref[...]
    )


# ----------------------------- wrappers --------------------------------------


def _decoder_step(tokens, hidden, cell, params):
    L, Bp, H = hidden.shape
    E = params["embedding"].shape[1]
    Vp = params["fc_w_t"].shape[1]
    vmem = pl.BlockSpec(memory_space=pltpu.VMEM)
    return pl.pallas_call(
        decoder_step_kernel,
        out_shape=(
            jax.ShapeDtypeStruct((Bp, Vp), jnp.float32),   # padded predictions
            jax.ShapeDtypeStruct((L, Bp, H), jnp.float32),  # new hidden
            jax.ShapeDtypeStruct((L, Bp, H), jnp.float32),  # new cell
        ),
        in_specs=[
            pl.BlockSpec(memory_space=pltpu.SMEM),   # token ids
            vmem, vmem, vmem,                        # embedding, hidden, cell
            vmem, vmem, vmem,                        # layer 0: w_ih, w_hh, b
            vmem, vmem, vmem,                        # layer 1: w_ih, w_hh, b
            vmem, vmem,                              # fc: w, b
        ],
        out_specs=(vmem, vmem, vmem),
        scratch_shapes=[pltpu.VMEM((Bp, E), jnp.float32)],  # gathered embeddings
    )(tokens, params["embedding"], hidden, cell,
      params["w_ih_t"][0], params["w_hh_t"][0], params["b"][0],
      params["w_ih_t"][1], params["w_hh_t"][1], params["b"][1],
      params["fc_w_t"], params["fc_b"])


def decoder_forward(params, x_tokens, hidden, cell):
    """Replicates Decoder.forward for a single time step.

    x_tokens: int32 [B]; hidden/cell: f32 [num_layers, B, H]
    returns (predictions [B, V], hidden [L, B, H], cell [L, B, H])
    """
    # TODO(synk): for autoregressive decode over T steps, move the time loop
    # inside the kernel (grid=(T,), weights resident, h/c carried in scratch).
    B = x_tokens.shape[0]
    V = params["output_size"]
    Bp = ((B + 7) // 8) * 8                 # pad batch to a full sublane group
    pad = Bp - B
    tok_p = jnp.pad(x_tokens.astype(jnp.int32), (0, pad))
    h_p = jnp.pad(hidden, ((0, 0), (0, pad), (0, 0)))
    c_p = jnp.pad(cell, ((0, 0), (0, pad), (0, 0)))

    preds_p, h_out, c_out = _decoder_step(tok_p, h_p, c_p, params)
    return preds_p[:B, :V], h_out[:, :B, :], c_out[:, :B, :]


# ----------------------------- parameter init --------------------------------


def init_params(key, input_size, embedding_size, hidden_size, output_size,
                num_layers):
    assert num_layers == NUM_LAYERS, "kernel unrolls exactly two LSTM layers"
    ks = jax.random.split(key, 3 + 4 * num_layers)
    scale = 0.1
    vpad = max(128, ((output_size + 127) // 128) * 128)  # lane-dense fc output

    fc_w = scale * jax.random.normal(ks[1], (hidden_size, output_size),
                                     jnp.float32)
    fc_b = scale * jax.random.normal(ks[2], (1, output_size), jnp.float32)

    params = {
        "num_layers": num_layers,
        "output_size": output_size,
        "embedding": scale * jax.random.normal(
            ks[0], (input_size, embedding_size), jnp.float32),
        # fc weight stored transposed [H, Vpad], zero-padded past V, bf16 MXU
        "fc_w_t": jnp.pad(fc_w, ((0, 0), (0, vpad - output_size))
                          ).astype(jnp.bfloat16),
        "fc_b": jnp.pad(fc_b, ((0, 0), (0, vpad - output_size))),
        "w_ih_t": [],
        "w_hh_t": [],
        "b": [],
    }
    for l in range(num_layers):
        in_dim = embedding_size if l == 0 else hidden_size
        k_ih, k_hh, k_bih, k_bhh = ks[3 + 4 * l: 3 + 4 * (l + 1)]
        # PyTorch weight_ih_l{l}: [4H, in_dim] -> stored transposed [in_dim,4H]
        params["w_ih_t"].append(
            (scale * jax.random.normal(k_ih, (in_dim, 4 * hidden_size),
                                       jnp.float32)).astype(jnp.bfloat16))
        params["w_hh_t"].append(
            (scale * jax.random.normal(k_hh, (hidden_size, 4 * hidden_size),
                                       jnp.float32)).astype(jnp.bfloat16))
        b_ih = scale * jax.random.normal(k_bih, (1, 4 * hidden_size),
                                         jnp.float32)
        b_hh = scale * jax.random.normal(k_bhh, (1, 4 * hidden_size),
                                         jnp.float32)
        params["b"].append(b_ih + b_hh)   # bias kept in f32
    return params


# ----------------------------- main -------------------------------------------


if __name__ == "__main__":
    # Small shapes consistent with the module's forward (scaled-down vocab/H).
    input_size = 50        # source-vocab size fed to the embedding
    embedding_size = 128   # lane-aligned
    hidden_size = 128      # 4*H = 512 -> every gate slice is a full 128-lane block
    output_size = 50       # len(english.vocab) stand-in (padded to 128 in-kernel)
    num_layers = 2
    batch = 4              # padded to 8 sublanes inside the wrapper

    key = jax.random.PRNGKey(0)
    k_p, k_x, k_h, k_c = jax.random.split(key, 4)

    params = init_params(k_p, input_size, embedding_size, hidden_size,
                         output_size, num_layers)

    x_tokens = jax.random.randint(k_x, (batch,), 0, input_size, jnp.int32)
    hidden0 = jax.random.normal(k_h, (num_layers, batch, hidden_size),
                                jnp.float32)
    cell0 = jax.random.normal(k_c, (num_layers, batch, hidden_size),
                              jnp.float32)

    preds, h1, c1 = decoder_forward(params, x_tokens, hidden0, cell0)
    jax.block_until_ready((preds, h1, c1))

    assert preds.shape == (batch, output_size)
    assert h1.shape == (num_layers, batch, hidden_size)
    assert c1.shape == (num_layers, batch, hidden_size)
    assert bool(jnp.all(jnp.isfinite(preds)))
    assert bool(jnp.all(jnp.isfinite(h1))) and bool(jnp.all(jnp.isfinite(c1)))
    print("KERNEL_OK")
</pallas_src>

<mosaic_0001>
module attributes {stable_mosaic.version = 11 : i64} {
  func.func @decoder_step_kernel(%arg0: memref<8xi32, #tpu.memory_space<smem>>, %arg1: memref<50x128xf32, #tpu.memory_space<vmem>>, %arg2: memref<2x8x128xf32, #tpu.memory_space<vmem>>, %arg3: memref<2x8x128xf32, #tpu.memory_space<vmem>>, %arg4: memref<128x512xbf16, #tpu.memory_space<vmem>>, %arg5: memref<128x512xbf16, #tpu.memory_space<vmem>>, %arg6: memref<1x512xf32, #tpu.memory_space<vmem>>, %arg7: memref<128x512xbf16, #tpu.memory_space<vmem>>, %arg8: memref<128x512xbf16, #tpu.memory_space<vmem>>, %arg9: memref<1x512xf32, #tpu.memory_space<vmem>>, %arg10: memref<128x128xbf16, #tpu.memory_space<vmem>>, %arg11: memref<1x128xf32, #tpu.memory_space<vmem>>, %arg12: memref<8x128xf32, #tpu.memory_space<vmem>>, %arg13: memref<2x8x128xf32, #tpu.memory_space<vmem>>, %arg14: memref<2x8x128xf32, #tpu.memory_space<vmem>>, %arg15: memref<8x128xf32, #tpu.memory_space<vmem>>) attributes {dimension_semantics = [], scalar_prefetch = 0 : i64, scratch_operands = 1 : i64, tpu.core_type = #tpu.core_type<tc>} {
    %c0 = arith.constant 0 : index
    %0 = memref.load %arg0[%c0] : memref<8xi32, #tpu.memory_space<smem>>
    %1 = arith.index_cast %0 : i32 to index
    %c0_0 = arith.constant 0 : index
    %2 = vector.load %arg1[%1, %c0_0] : memref<50x128xf32, #tpu.memory_space<vmem>>, vector<1x128xf32>
    %c0_1 = arith.constant 0 : index
    %c0_2 = arith.constant 0 : index
    %3 = vector.load %arg15[%c0_1, %c0_2] : memref<8x128xf32, #tpu.memory_space<vmem>>, vector<1x128xf32>
    tpu.vector_store %arg15[%c0_1, %c0_2], %2 {strides = array<i32>} : memref<8x128xf32, #tpu.memory_space<vmem>>, vector<1x128xf32>,
    %c1 = arith.constant 1 : index
    %4 = memref.load %arg0[%c1] : memref<8xi32, #tpu.memory_space<smem>>
    %5 = arith.index_cast %4 : i32 to index
    %c0_3 = arith.constant 0 : index
    %6 = vector.load %arg1[%5, %c0_3] : memref<50x128xf32, #tpu.memory_space<vmem>>, vector<1x128xf32>
    %c1_4 = arith.constant 1 : index
    %c0_5 = arith.constant 0 : index
    %7 = vector.load %arg15[%c1_4, %c0_5] : memref<8x128xf32, #tpu.memory_space<vmem>>, vector<1x128xf32>
    tpu.vector_store %arg15[%c1_4, %c0_5], %6 {strides = array<i32>} : memref<8x128xf32, #tpu.memory_space<vmem>>, vector<1x128xf32>,
    %c2 = arith.constant 2 : index
    %8 = memref.load %arg0[%c2] : memref<8xi32, #tpu.memory_space<smem>>
    %9 = arith.index_cast %8 : i32 to index
    %c0_6 = arith.constant 0 : index
    %10 = vector.load %arg1[%9, %c0_6] : memref<50x128xf32, #tpu.memory_space<vmem>>, vector<1x128xf32>
    %c2_7 = arith.constant 2 : index
    %c0_8 = arith.constant 0 : index
    %11 = vector.load %arg15[%c2_7, %c0_8] : memref<8x128xf32, #tpu.memory_space<vmem>>, vector<1x128xf32>
    tpu.vector_store %arg15[%c2_7, %c0_8], %10 {strides = array<i32>} : memref<8x128xf32, #tpu.memory_space<vmem>>, vector<1x128xf32>,
    %c3 = arith.constant 3 : index
    %12 = memref.load %arg0[%c3] : memref<8xi32, #tpu.memory_space<smem>>
    %13 = arith.index_cast %12 : i32 to index
    %c0_9 = arith.constant 0 : index
    %14 = vector.load %arg1[%13, %c0_9] : memref<50x128xf32, #tpu.memory_space<vmem>>, vector<1x128xf32>
    %c3_10 = arith.constant 3 : index
    %c0_11 = arith.constant 0 : index
    %15 = vector.load %arg15[%c3_10, %c0_11] : memref<8x128xf32, #tpu.memory_space<vmem>>, vector<1x128xf32>
    tpu.vector_store %arg15[%c3_10, %c0_11], %14 {strides = array<i32>} : memref<8x128xf32, #tpu.memory_space<vmem>>, vector<1x128xf32>,
    %c4 = arith.constant 4 : index
    %16 = memref.load %arg0[%c4] : memref<8xi32, #tpu.memory_space<smem>>
    %17 = arith.index_cast %16 : i32 to index
    %c0_12 = arith.constant 0 : index
    %18 = vector.load %arg1[%17, %c0_12] : memref<50x128xf32, #tpu.memory_space<vmem>>, vector<1x128xf32>
    %c4_13 = arith.constant 4 : index
    %c0_14 = arith.constant 0 : index
    %19 = vector.load %arg15[%c4_13, %c0_14] : memref<8x128xf32, #tpu.memory_space<vmem>>, vector<1x128xf32>
    tpu.vector_store %arg15[%c4_13, %c0_14], %18 {strides = array<i32>} : memref<8x128xf32, #tpu.memory_space<vmem>>, vector<1x128xf32>,
    %c5 = arith.constant 5 : index
    %20 = memref.load %arg0[%c5] : memref<8xi32, #tpu.memory_space<smem>>
    %21 = arith.index_cast %20 : i32 to index
    %c0_15 = arith.constant 0 : index
    %22 = vector.load %arg1[%21, %c0_15] : memref<50x128xf32, #tpu.memory_space<vmem>>, vector<1x128xf32>
    %c5_16 = arith.constant 5 : index
    %c0_17 = arith.constant 0 : index
    %23 = vector.load %arg15[%c5_16, %c0_17] : memref<8x128xf32, #tpu.memory_space<vmem>>, vector<1x128xf32>
    tpu.vector_store %arg15[%c5_16, %c0_17], %22 {strides = array<i32>} : memref<8x128xf32, #tpu.memory_space<vmem>>, vector<1x128xf32>,
    %c6 = arith.constant 6 : index
    %24 = memref.load %arg0[%c6] : memref<8xi32, #tpu.memory_space<smem>>
    %25 = arith.index_cast %24 : i32 to index
    %c0_18 = arith.constant 0 : index
    %26 = vector.load %arg1[%25, %c0_18] : memref<50x128xf32, #tpu.memory_space<vmem>>, vector<1x128xf32>
    %c6_19 = arith.constant 6 : index
    %c0_20 = arith.constant 0 : index
    %27 = vector.load %arg15[%c6_19, %c0_20] : memref<8x128xf32, #tpu.memory_space<vmem>>, vector<1x128xf32>
    tpu.vector_store %arg15[%c6_19, %c0_20], %26 {strides = array<i32>} : memref<8x128xf32, #tpu.memory_space<vmem>>, vector<1x128xf32>,
    %c7 = arith.constant 7 : index
    %28 = memref.load %arg0[%c7] : memref<8xi32, #tpu.memory_space<smem>>
    %29 = arith.index_cast %28 : i32 to index
    %c0_21 = arith.constant 0 : index
    %30 = vector.load %arg1[%29, %c0_21] : memref<50x128xf32, #tpu.memory_space<vmem>>, vector<1x128xf32>
    %c7_22 = arith.constant 7 : index
    %c0_23 = arith.constant 0 : index
    %31 = vector.load %arg15[%c7_22, %c0_23] : memref<8x128xf32, #tpu.memory_space<vmem>>, vector<1x128xf32>
    tpu.vector_store %arg15[%c7_22, %c0_23], %30 {strides = array<i32>} : memref<8x128xf32, #tpu.memory_space<vmem>>, vector<1x128xf32>,
    %c0_24 = arith.constant 0 : index
    %c0_25 = arith.constant 0 : index
    %32 = vector.load %arg15[%c0_24, %c0_25] : memref<8x128xf32, #tpu.memory_space<vmem>>, vector<8x128xf32>
    %c0_26 = arith.constant 0 : index
    %c0_27 = arith.constant 0 : index
    %c0_28 = arith.constant 0 : index
    %33 = vector.load %arg2[%c0_26, %c0_27, %c0_28] : memref<2x8x128xf32, #tpu.memory_space<vmem>>, vector<1x8x128xf32>
    %34 = vector.shape_cast %33 : vector<1x8x128xf32> to vector<8x128xf32>
    %c0_29 = arith.constant 0 : index
    %c0_30 = arith.constant 0 : index
    %c0_31 = arith.constant 0 : index
    %35 = vector.load %arg3[%c0_29, %c0_30, %c0_31] : memref<2x8x128xf32, #tpu.memory_space<vmem>>, vector<1x8x128xf32>
    %36 = vector.shape_cast %35 : vector<1x8x128xf32> to vector<8x128xf32>
    %c0_32 = arith.constant 0 : index
    %c0_33 = arith.constant 0 : index
    %37 = vector.load %arg4[%c0_32, %c0_33] : memref<128x512xbf16, #tpu.memory_space<vmem>>, vector<128x512xbf16>
    %c0_34 = arith.constant 0 : index
    %c0_35 = arith.constant 0 : index
    %38 = vector.load %arg5[%c0_34, %c0_35] : memref<128x512xbf16, #tpu.memory_space<vmem>>, vector<128x512xbf16>
    %c0_36 = arith.constant 0 : index
    %c0_37 = arith.constant 0 : index
    %39 = vector.load %arg6[%c0_36, %c0_37] : memref<1x512xf32, #tpu.memory_space<vmem>>, vector<1x512xf32>
    %40 = arith.truncf %32 : vector<8x128xf32> to vector<8x128xbf16>
    %cst = arith.constant dense<0.000000e+00> : vector<8x512xf32>
    %41 = tpu.matmul %40, %37, %cst {dimension_numbers = #tpu.dot_dimension_numbers<[1], [0], [0], [1], [0, 0, 1, 1], [], []>} : vector<8x128xbf16>, vector<128x512xbf16>, vector<8x512xf32> -> vector<8x512xf32>
    %42 = arith.truncf %34 : vector<8x128xf32> to vector<8x128xbf16>
    %cst_38 = arith.constant dense<0.000000e+00> : vector<8x512xf32>
    %43 = tpu.matmul %42, %38, %cst_38 {dimension_numbers = #tpu.dot_dimension_numbers<[1], [0], [0], [1], [0, 0, 1, 1], [], []>} : vector<8x128xbf16>, vector<128x512xbf16>, vector<8x512xf32> -> vector<8x512xf32>
    %44 = arith.addf %41, %43 : vector<8x512xf32>
    %45 = vector.broadcast %39 : vector<1x512xf32> to vector<8x512xf32>
    %46 = arith.addf %44, %45 : vector<8x512xf32>
    %47 = vector.extract_strided_slice %46 {offsets = [0, 0], sizes = [8, 256], strides = [1, 1]} : vector<8x512xf32> to vector<8x256xf32>
    %48 = arith.negf %47 : vector<8x256xf32>
    %49 = math.exp %48 : vector<8x256xf32>
    %cst_39 = arith.constant 1.000000e+00 : f32
    %50 = vector.broadcast %cst_39 : f32 to vector<8x256xf32>
    %51 = arith.addf %50, %49 : vector<8x256xf32>
    %52 = arith.divf %50, %51 : vector<8x256xf32>
    %53 = vector.extract_strided_slice %52 {offsets = [0, 0], sizes = [8, 128], strides = [1, 1]} : vector<8x256xf32> to vector<8x128xf32>
    %54 = vector.extract_strided_slice %52 {offsets = [0, 128], sizes = [8, 128], strides = [1, 1]} : vector<8x256xf32> to vector<8x128xf32>
    %55 = vector.extract_strided_slice %46 {offsets = [0, 256], sizes = [8, 128], strides = [1, 1]} : vector<8x512xf32> to vector<8x128xf32>
    %56 = math.tanh %55 : vector<8x128xf32>
    %57 = vector.extract_strided_slice %46 {offsets = [0, 384], sizes = [8, 128], strides = [1, 1]} : vector<8x512xf32> to vector<8x128xf32>
    %58 = arith.negf %57 : vector<8x128xf32>
    %59 = math.exp %58 : vector<8x128xf32>
    %cst_40 = arith.constant 1.000000e+00 : f32
    %60 = vector.broadcast %cst_40 : f32 to vector<8x128xf32>
    %61 = arith.addf %60, %59 : vector<8x128xf32>
    %62 = arith.divf %60, %61 : vector<8x128xf32>
    %63 = arith.mulf %54, %36 : vector<8x128xf32>
    %64 = arith.mulf %53, %56 : vector<8x128xf32>
    %65 = arith.addf %63, %64 : vector<8x128xf32>
    %66 = math.tanh %65 : vector<8x128xf32>
    %67 = arith.mulf %62, %66 : vector<8x128xf32>
    %c0_41 = arith.constant 0 : index
    %c0_42 = arith.constant 0 : index
    %c0_43 = arith.constant 0 : index
    %68 = vector.load %arg13[%c0_41, %c0_42, %c0_43] : memref<2x8x128xf32, #tpu.memory_space<vmem>>, vector<1x8x128xf32>
    %69 = vector.shape_cast %68 : vector<1x8x128xf32> to vector<8x128xf32>
    %70 = vector.shape_cast %67 : vector<8x128xf32> to vector<1x8x128xf32>
    tpu.vector_store %arg13[%c0_41, %c0_42, %c0_43], %70 {strides = array<i32>} : memref<2x8x128xf32, #tpu.memory_space<vmem>>, vector<1x8x128xf32>,
    %c0_44 = arith.constant 0 : index
    %c0_45 = arith.constant 0 : index
    %c0_46 = arith.constant 0 : index
    %71 = vector.load %arg14[%c0_44, %c0_45, %c0_46] : memref<2x8x128xf32, #tpu.memory_space<vmem>>, vector<1x8x128xf32>
    %72 = vector.shape_cast %71 : vector<1x8x128xf32> to vector<8x128xf32>
    %73 = vector.shape_cast %65 : vector<8x128xf32> to vector<1x8x128xf32>
    tpu.vector_store %arg14[%c0_44, %c0_45, %c0_46], %73 {strides = array<i32>} : memref<2x8x128xf32, #tpu.memory_space<vmem>>, vector<1x8x128xf32>,
    %c1_47 = arith.constant 1 : index
    %c0_48 = arith.constant 0 : index
    %c0_49 = arith.constant 0 : index
    %74 = vector.load %arg2[%c1_47, %c0_48, %c0_49] : memref<2x8x128xf32, #tpu.memory_space<vmem>>, vector<1x8x128xf32>
    %75 = vector.shape_cast %74 : vector<1x8x128xf32> to vector<8x128xf32>
    %c1_50 = arith.constant 1 : index
    %c0_51 = arith.constant 0 : index
    %c0_52 = arith.constant 0 : index
    %76 = vector.load %arg3[%c1_50, %c0_51, %c0_52] : memref<2x8x128xf32, #tpu.memory_space<vmem>>, vector<1x8x128xf32>
    %77 = vector.shape_cast %76 : vector<1x8x128xf32> to vector<8x128xf32>
    %c0_53 = arith.constant 0 : index
    %c0_54 = arith.constant 0 : index
    %78 = vector.load %arg7[%c0_53, %c0_54] : memref<128x512xbf16, #tpu.memory_space<vmem>>, vector<128x512xbf16>
    %c0_55 = arith.constant 0 : index
    %c0_56 = arith.constant 0 : index
    %79 = vector.load %arg8[%c0_55, %c0_56] : memref<128x512xbf16, #tpu.memory_space<vmem>>, vector<128x512xbf16>
    %c0_57 = arith.constant 0 : index
    %c0_58 = arith.constant 0 : index
    %80 = vector.load %arg9[%c0_57, %c0_58] : memref<1x512xf32, #tpu.memory_space<vmem>>, vector<1x512xf32>
    %81 = arith.truncf %67 : vector<8x128xf32> to vector<8x128xbf16>
    %cst_59 = arith.constant dense<0.000000e+00> : vector<8x512xf32>
    %82 = tpu.matmul %81, %78, %cst_59 {dimension_numbers = #tpu.dot_dimension_numbers<[1], [0], [0], [1], [0, 0, 1, 1], [], []>} : vector<8x128xbf16>, vector<128x512xbf16>, vector<8x512xf32> -> vector<8x512xf32>
    %83 = arith.truncf %75 : vector<8x128xf32> to vector<8x128xbf16>
    %cst_60 = arith.constant dense<0.000000e+00> : vector<8x512xf32>
    %84 = tpu.matmul %83, %79, %cst_60 {dimension_numbers = #tpu.dot_dimension_numbers<[1], [0], [0], [1], [0, 0, 1, 1], [], []>} : vector<8x128xbf16>, vector<128x512xbf16>, vector<8x512xf32> -> vector<8x512xf32>
    %85 = arith.addf %82, %84 : vector<8x512xf32>
    %86 = vector.broadcast %80 : vector<1x512xf32> to vector<8x512xf32>
    %87 = arith.addf %85, %86 : vector<8x512xf32>
    %88 = vector.extract_strided_slice %87 {offsets = [0, 0], sizes = [8, 256], strides = [1, 1]} : vector<8x512xf32> to vector<8x256xf32>
    %89 = arith.negf %88 : vector<8x256xf32>
    %90 = math.exp %89 : vector<8x256xf32>
    %cst_61 = arith.constant 1.000000e+00 : f32
    %91 = vector.broadcast %cst_61 : f32 to vector<8x256xf32>
    %92 = arith.addf %91, %90 : vector<8x256xf32>
    %93 = arith.divf %91, %92 : vector<8x256xf32>
    %94 = vector.extract_strided_slice %93 {offsets = [0, 0], sizes = [8, 128], strides = [1, 1]} : vector<8x256xf32> to vector<8x128xf32>
    %95 = vector.extract_strided_slice %93 {offsets = [0, 128], sizes = [8, 128], strides = [1, 1]} : vector<8x256xf32> to vector<8x128xf32>
    %96 = vector.extract_strided_slice %87 {offsets = [0, 256], sizes = [8, 128], strides = [1, 1]} : vector<8x512xf32> to vector<8x128xf32>
    %97 = math.tanh %96 : vector<8x128xf32>
    %98 = vector.extract_strided_slice %87 {offsets = [0, 384], sizes = [8, 128], strides = [1, 1]} : vector<8x512xf32> to vector<8x128xf32>
    %99 = arith.negf %98 : vector<8x128xf32>
    %100 = math.exp %99 : vector<8x128xf32>
    %cst_62 = arith.constant 1.000000e+00 : f32
    %101 = vector.broadcast %cst_62 : f32 to vector<8x128xf32>
    %102 = arith.addf %101, %100 : vector<8x128xf32>
    %103 = arith.divf %101, %102 : vector<8x128xf32>
    %104 = arith.mulf %95, %77 : vector<8x128xf32>
    %105 = arith.mulf %94, %97 : vector<8x128xf32>
    %106 = arith.addf %104, %105 : vector<8x128xf32>
    %107 = math.tanh %106 : vector<8x128xf32>
    %108 = arith.mulf %103, %107 : vector<8x128xf32>
    %c1_63 = arith.constant 1 : index
    %c0_64 = arith.constant 0 : index
    %c0_65 = arith.constant 0 : index
    %109 = vector.load %arg13[%c1_63, %c0_64, %c0_65] : memref<2x8x128xf32, #tpu.memory_space<vmem>>, vector<1x8x128xf32>
    %110 = vector.shape_cast %109 : vector<1x8x128xf32> to vector<8x128xf32>
    %111 = vector.shape_cast %108 : vector<8x128xf32> to vector<1x8x128xf32>
    tpu.vector_store %arg13[%c1_63, %c0_64, %c0_65], %111 {strides = array<i32>} : memref<2x8x128xf32, #tpu.memory_space<vmem>>, vector<1x8x128xf32>,
    %c1_66 = arith.constant 1 : index
    %c0_67 = arith.constant 0 : index
    %c0_68 = arith.constant 0 : index
    %112 = vector.load %arg14[%c1_66, %c0_67, %c0_68] : memref<2x8x128xf32, #tpu.memory_space<vmem>>, vector<1x8x128xf32>
    %113 = vector.shape_cast %112 : vector<1x8x128xf32> to vector<8x128xf32>
    %114 = vector.shape_cast %106 : vector<8x128xf32> to vector<1x8x128xf32>
    tpu.vector_store %arg14[%c1_66, %c0_67, %c0_68], %114 {strides = array<i32>} : memref<2x8x128xf32, #tpu.memory_space<vmem>>, vector<1x8x128xf32>,
    %115 = arith.truncf %108 : vector<8x128xf32> to vector<8x128xbf16>
    %c0_69 = arith.constant 0 : index
    %c0_70 = arith.constant 0 : index
    %116 = vector.load %arg10[%c0_69, %c0_70] : memref<128x128xbf16, #tpu.memory_space<vmem>>, vector<128x128xbf16>
    %cst_71 = arith.constant dense<0.000000e+00> : vector<8x128xf32>
    %117 = tpu.matmul %115, %116, %cst_71 {dimension_numbers = #tpu.dot_dimension_numbers<[1], [0], [0], [1], [0, 0, 1, 1], [], []>} : vector<8x128xbf16>, vector<128x128xbf16>, vector<8x128xf32> -> vector<8x128xf32>
    %c0_72 = arith.constant 0 : index
    %c0_73 = arith.constant 0 : index
    %118 = vector.load %arg11[%c0_72, %c0_73] : memref<1x128xf32, #tpu.memory_space<vmem>>, vector<1x128xf32>
    %119 = vector.broadcast %118 : vector<1x128xf32> to vector<8x128xf32>
    %120 = arith.addf %117, %119 : vector<8x128xf32>
    %c0_74 = arith.constant 0 : index
    %c0_75 = arith.constant 0 : index
    %121 = vector.load %arg12[%c0_74, %c0_75] : memref<8x128xf32, #tpu.memory_space<vmem>>, vector<8x128xf32>
    tpu.vector_store %arg12[%c0_74, %c0_75], %120 {strides = array<i32>} : memref<8x128xf32, #tpu.memory_space<vmem>>, vector<8x128xf32>,
    return
  }
}

</mosaic_0001>

<llo_original>
// kernel: tpu_custom_call.1
$region0: #{tpu_custom_call.1}
  #allocation0 [shape = 'u32[]', space=smem, size = 0x4, offset = 0x4, fixed_abs, tag = 'smem constant byte address 0x4 - core index']
  #allocation1 [shape = 'u32[144,128]{1,0:T(1,128)}', space=vmem, size = 0x12000, scoped, tag = 'internal scratch']
  #allocation2 [shape = 'f32[8,128]{1,0:T(8,128)}', space=vmem, size = 0x1000, scoped, tag = 'scratch operand']
  %s0 = inlined_call_operand.hbm [shape: s32[8], index: 0, kind: input, shape index: {}]
  %s1 = inlined_call_operand.hbm [shape: f32[50,128], index: 1, kind: input, shape index: {}]
  %s2 = inlined_call_operand.hbm [shape: f32[2,8,128], index: 2, kind: input, shape index: {}]
  %s3 = inlined_call_operand.hbm [shape: f32[2,8,128], index: 3, kind: input, shape index: {}]
  %s4 = inlined_call_operand.hbm [shape: bf16[128,512], index: 4, kind: input, shape index: {}]
  %s5 = inlined_call_operand.hbm [shape: bf16[128,512], index: 5, kind: input, shape index: {}]
  %s6 = inlined_call_operand.vmem [shape: f32[1,512], index: 6, kind: input, shape index: {}]
  %s7 = inlined_call_operand.hbm [shape: bf16[128,512], index: 7, kind: input, shape index: {}]
  %s8 = inlined_call_operand.hbm [shape: bf16[128,512], index: 8, kind: input, shape index: {}]
  %s9 = inlined_call_operand.vmem [shape: f32[1,512], index: 9, kind: input, shape index: {}]
  %s10 = inlined_call_operand.hbm [shape: bf16[128,128], index: 10, kind: input, shape index: {}]
  %s11 = inlined_call_operand.vmem [shape: f32[1,128], index: 11, kind: input, shape index: {}]
  %s12 = inlined_call_operand.hbm [shape: f32[8,128], index: 12, kind: output, shape index: {0}]
  %s13 = inlined_call_operand.hbm [shape: f32[2,8,128], index: 13, kind: output, shape index: {1}]
  %s14 = inlined_call_operand.hbm [shape: f32[2,8,128], index: 14, kind: output, shape index: {2}]
  %15 = xla_tuple %s12, %s13, %s14
  %s16 = sld [smem:[#allocation0]]
  $region110: #{tpu_custom_call.1} parent=0
    _
  %s18 = ssub.s32 1, %s16
  %s19 = scalar_select 0, %s18, %s16
  $region1: #{tpu_custom_call.1} parent=0
    #allocation3 [shape = 'u8[512]{0}', space=smem, size = 0x200, scoped, tag = 'input window, operand 0, single buffered']
    #allocation4 [shape = 's32[1]{0}', space=sflag, size = 0x4, scoped, tag = 'scoped memory for tpu_custom_call.1']
    #allocation5 [shape = 's32[1]{0}', space=sflag, size = 0x4, scoped, tag = 'scoped memory for tpu_custom_call.1']
    #allocation6 [shape = 's32[1]{0}', space=sflag, size = 0x4, scoped, tag = 'scoped memory for tpu_custom_call.1']
    #allocation7 [shape = 'u8[28672]{0}', space=vmem, size = 0x7000, scoped, tag = 'input window, operand 1, single buffered']
    #allocation8 [shape = 'u8[8192]{0}', space=vmem, size = 0x2000, scoped, tag = 'input window, operand 2, single buffered']
    #allocation9 [shape = 's32[1]{0}', space=sflag, size = 0x4, scoped, tag = 'scoped memory for tpu_custom_call.1']
    #allocation10 [shape = 'u8[8192]{0}', space=vmem, size = 0x2000, scoped, tag = 'input window, operand 3, single buffered']
    #allocation11 [shape = 'u8[131072]{0}', space=vmem, size = 0x20000, scoped, tag = 'input window, operand 4, single buffered']
    #allocation12 [shape = 's32[1]{0}', space=sflag, size = 0x4, scoped, tag = 'scoped memory for tpu_custom_call.1']
    #allocation13 [shape = 'u8[131072]{0}', space=vmem, size = 0x20000, scoped, tag = 'input window, operand 5, single buffered']
    #allocation14 [shape = 'u8[131072]{0}', space=vmem, size = 0x20000, scoped, tag = 'input window, operand 7, single buffered']
    #allocation15 [shape = 's32[1]{0}', space=sflag, size = 0x4, scoped, tag = 'scoped memory for tpu_custom_call.1']
    #allocation16 [shape = 'u8[131072]{0}', space=vmem, size = 0x20000, scoped, tag = 'input window, operand 8, single buffered']
    #allocation17 [shape = 'u8[32768]{0}', space=vmem, size = 0x8000, scoped, tag = 'input window, operand 10, single buffered']
    #allocation18 [shape = 's32[1]{0}', space=sflag, size = 0x4, scoped, tag = 'scoped memory for tpu_custom_call.1']
    #allocation19 [shape = 'u8[4096]{0}', space=vmem, size = 0x1000, scoped, tag = 'output window, operand 0, single buffered']
    #allocation20 [shape = 'u8[8192]{0}', space=vmem, size = 0x2000, scoped, tag = 'output window, operand 1, single buffered']
    #allocation21 [shape = 's32[1]{0}', space=sflag, size = 0x4, scoped, tag = 'scoped memory for tpu_custom_call.1']
    #allocation22 [shape = 'u8[8192]{0}', space=vmem, size = 0x2000, scoped, tag = 'output window, operand 2, single buffered']
    %20 = vsyncpa [#allocation6], 0
    %21 = vsyncpa [#allocation4], 0
    %22 = vsyncpa [#allocation9], 0
    %23 = vsyncpa [#allocation12], 0
    %24 = vsyncpa [#allocation15], 0
    %25 = vsyncpa [#allocation18], 0
    %26 = vsyncpa [#allocation5], 0
    %27 = vsyncpa [#allocation21], 0
    // Predicated region
    $region2: #{tpu_custom_call.1} parent=1 // pred_check
      _
    $region3: #{tpu_custom_call.1} parent=1 // pred_check_branch
      %29 = sbr.rel (0) target = $region5
    $region4: #{tpu_custom_call.1} parent=1 // pred_region
      %s31 = ssub.s32 16, 16
      %32 = vsyncadd [#allocation6], %s31
      %35 = dma.hbm_to_smem %s0, 16, [#allocation3], [#allocation6]
    $region5: #{tpu_custom_call.1} parent=1 // pred_fallthru
      _
    // Predicated region
    $region6: #{tpu_custom_call.1} parent=1 // pred_check
      _
    $region7: #{tpu_custom_call.1} parent=1 // pred_check_branch
      %37 = sbr.rel (0) target = $region9
    $region8: #{tpu_custom_call.1} parent=1 // pred_region
      %s39 = ssub.s32 896, 896
      %40 = vsyncadd [#allocation4], %s39
      %s41 = sshll.u32 [#allocation7], 4
      %s42 = int_to_ptr.vmem [resolvable:$true] %s41
      %47 = dma.hbm_to_vmem [thread:$0]  %s1, 896, %s42, [#allocation4], 128, 128, 8
    $region9: #{tpu_custom_call.1} parent=1 // pred_fallthru
      _
    // Predicated region
    $region10: #{tpu_custom_call.1} parent=1 // pred_check
      _
    $region11: #{tpu_custom_call.1} parent=1 // pred_check_branch
      %49 = sbr.rel (0) target = $region13
    $region12: #{tpu_custom_call.1} parent=1 // pred_region
      %s51 = ssub.s32 256, 256
      %52 = vsyncadd [#allocation9], %s51
      %s53 = sshll.u32 [#allocation8], 4
      %s54 = int_to_ptr.vmem [resolvable:$true] %s53
      %59 = dma.hbm_to_vmem [thread:$0]  %s2, 256, %s54, [#allocation9], 128, 128, 8
    $region13: #{tpu_custom_call.1} parent=1 // pred_fallthru
      _
    // Predicated region
    $region14: #{tpu_custom_call.1} parent=1 // pred_check
      _
    $region15: #{tpu_custom_call.1} parent=1 // pred_check_branch
      %61 = sbr.rel (0) target = $region17
    $region16: #{tpu_custom_call.1} parent=1 // pred_region
      %s63 = ssub.s32 256, 256
      %64 = vsyncadd [#allocation9], %s63
      %s65 = sshll.u32 [#allocation10], 4
      %s66 = int_to_ptr.vmem [resolvable:$true] %s65
      %71 = dma.hbm_to_vmem [thread:$0]  %s3, 256, %s66, [#allocation9], 128, 128, 8
    $region17: #{tpu_custom_call.1} parent=1 // pred_fallthru
      _
    // Predicated region
    $region18: #{tpu_custom_call.1} parent=1 // pred_check
      _
    $region19: #{tpu_custom_call.1} parent=1 // pred_check_branch
      %73 = sbr.rel (0) target = $region21
    $region20: #{tpu_custom_call.1} parent=1 // pred_region
      %s75 = ssub.s32 4096, 4096
      %76 = vsyncadd [#allocation12], %s75
      %s77 = sshll.u32 [#allocation11], 4
      %s78 = int_to_ptr.vmem [resolvable:$true] %s77
      %83 = dma.hbm_to_vmem [thread:$0]  %s4, 4096, %s78, [#allocation12], 256, 256, 16
    $region21: #{tpu_custom_call.1} parent=1 // pred_fallthru
      _
    // Predicated region
    $region22: #{tpu_custom_call.1} parent=1 // pred_check
      _
    $region23: #{tpu_custom_call.1} parent=1 // pred_check_branch
      %85 = sbr.rel (0) target = $region25
    $region24: #{tpu_custom_call.1} parent=1 // pred_region
      %s87 = ssub.s32 4096, 4096
      %88 = vsyncadd [#allocation12], %s87
      %s89 = sshll.u32 [#allocation13], 4
      %s90 = int_to_ptr.vmem [resolvable:$true] %s89
      %95 = dma.hbm_to_vmem [thread:$0]  %s5, 4096, %s90, [#allocation12], 256, 256, 16
    $region25: #{tpu_custom_call.1} parent=1 // pred_fallthru
      _
    // Predicated region
    $region26: #{tpu_custom_call.1} parent=1 // pred_check
      _
    $region27: #{tpu_custom_call.1} parent=1 // pred_check_branch
      %97 = sbr.rel (0) target = $region29
    $region28: #{tpu_custom_call.1} parent=1 // pred_region
      _
    $region29: #{tpu_custom_call.1} parent=1 // pred_fallthru
      _
    // Predicated region
    $region30: #{tpu_custom_call.1} parent=1 // pred_check
      _
    $region31: #{tpu_custom_call.1} parent=1 // pred_check_branch
      %99 = sbr.rel (0) target = $region33
    $region32: #{tpu_custom_call.1} parent=1 // pred_region
      %s101 = ssub.s32 4096, 4096
      %102 = vsyncadd [#allocation15], %s101
      %s103 = sshll.u32 [#allocation14], 4
      %s104 = int_to_ptr.vmem [resolvable:$true] %s103
      %109 = dma.hbm_to_vmem [thread:$0]  %s7, 4096, %s104, [#allocation15], 256, 256, 16
    $region33: #{tpu_custom_call.1} parent=1 // pred_fallthru
      _
    // Predicated region
    $region34: #{tpu_custom_call.1} parent=1 // pred_check
      _
    $region35: #{tpu_custom_call.1} parent=1 // pred_check_branch
      %111 = sbr.rel (0) target = $region37
    $region36: #{tpu_custom_call.1} parent=1 // pred_region
      %s113 = ssub.s32 4096, 4096
      %114 = vsyncadd [#allocation15], %s113
      %s115 = sshll.u32 [#allocation16], 4
      %s116 = int_to_ptr.vmem [resolvable:$true] %s115
      %121 = dma.hbm_to_vmem [thread:$0]  %s8, 4096, %s116, [#allocation15], 256, 256, 16
    $region37: #{tpu_custom_call.1} parent=1 // pred_fallthru
      _
    // Predicated region
    $region38: #{tpu_custom_call.1} parent=1 // pred_check
      _
    $region39: #{tpu_custom_call.1} parent=1 // pred_check_branch
      %123 = sbr.rel (0) target = $region41
    $region40: #{tpu_custom_call.1} parent=1 // pred_region
      _
    $region41: #{tpu_custom_call.1} parent=1 // pred_fallthru
      _
    // Predicated region
    $region42: #{tpu_custom_call.1} parent=1 // pred_check
      _
    $region43: #{tpu_custom_call.1} parent=1 // pred_check_branch
      %125 = sbr.rel (0) target = $region45
    $region44: #{tpu_custom_call.1} parent=1 // pred_region
      %s127 = ssub.s32 1024, 1024
      %128 = vsyncadd [#allocation18], %s127
      %s129 = sshll.u32 [#allocation17], 4
      %s130 = int_to_ptr.vmem [resolvable:$true] %s129
      %135 = dma.hbm_to_vmem [thread:$0]  %s10, 1024, %s130, [#allocation18], 64, 64, 4
    $region45: #{tpu_custom_call.1} parent=1 // pred_fallthru
      _
    // Predicated region
    $region46: #{tpu_custom_call.1} parent=1 // pred_check
      _
    $region47: #{tpu_custom_call.1} parent=1 // pred_check_branch
      %137 = sbr.rel (0) target = $region49
    $region48: #{tpu_custom_call.1} parent=1 // pred_region
      _
    $region49: #{tpu_custom_call.1} parent=1 // pred_fallthru
      _
    // Predicated region
    $region50: #{tpu_custom_call.1} parent=1 // pred_check
      _
    $region51: #{tpu_custom_call.1} parent=1 // pred_check_branch
      %139 = sbr.rel (0) target = $region53
    $region52: #{tpu_custom_call.1} parent=1 // pred_region
      %140 = dma.done [#allocation6], 16
    $region53: #{tpu_custom_call.1} parent=1 // pred_fallthru
      _
    // Predicated region
    $region54: #{tpu_custom_call.1} parent=1 // pred_check
      _
    $region55: #{tpu_custom_call.1} parent=1 // pred_check_branch
      %142 = sbr.rel (0) target = $region57
    $region56: #{tpu_custom_call.1} parent=1 // pred_region
      %143 = dma.done [#allocation4], 896
    $region57: #{tpu_custom_call.1} parent=1 // pred_fallthru
      _
    // Predicated region
    $region58: #{tpu_custom_call.1} parent=1 // pred_check
      _
    $region59: #{tpu_custom_call.1} parent=1 // pred_check_branch
      %145 = sbr.rel (0) target = $region61
    $region60: #{tpu_custom_call.1} parent=1 // pred_region
      %146 = dma.done [#allocation9], 256
    $region61: #{tpu_custom_call.1} parent=1 // pred_fallthru
      _
    // Predicated region
    $region62: #{tpu_custom_call.1} parent=1 // pred_check
      _
    $region63: #{tpu_custom_call.1} parent=1 // pred_check_branch
      %148 = sbr.rel (0) target = $region65
    $region64: #{tpu_custom_call.1} parent=1 // pred_region
      %149 = dma.done [#allocation9], 256
    $region65: #{tpu_custom_call.1} parent=1 // pred_fallthru
      _
    // Predicated region
    $region66: #{tpu_custom_call.1} parent=1 // pred_check
      _
    $region67: #{tpu_custom_call.1} parent=1 // pred_check_branch
      %151 = sbr.rel (0) target = $region69
    $region68: #{tpu_custom_call.1} parent=1 // pred_region
      %152 = dma.done [#allocation12], 4096
    $region69: #{tpu_custom_call.1} parent=1 // pred_fallthru
      _
    // Predicated region
    $region70: #{tpu_custom_call.1} parent=1 // pred_check
      _
    $region71: #{tpu_custom_call.1} parent=1 // pred_check_branch
      %154 = sbr.rel (0) target = $region73
    $region72: #{tpu_custom_call.1} parent=1 // pred_region
      %155 = dma.done [#allocation12], 4096
    $region73: #{tpu_custom_call.1} parent=1 // pred_fallthru
      _
    // Predicated region
    $region74: #{tpu_custom_call.1} parent=1 // pred_check
      _
    $region75: #{tpu_custom_call.1} parent=1 // pred_check_branch
      %157 = sbr.rel (0) target = $region77
    $region76: #{tpu_custom_call.1} parent=1 // pred_region
      %158 = dma.done [#allocation15], 4096
    $region77: #{tpu_custom_call.1} parent=1 // pred_fallthru
      _
    // Predicated region
    $region78: #{tpu_custom_call.1} parent=1 // pred_check
      _
    $region79: #{tpu_custom_call.1} parent=1 // pred_check_branch
      %160 = sbr.rel (0) target = $region81
    $region80: #{tpu_custom_call.1} parent=1 // pred_region
      %161 = dma.done [#allocation15], 4096
    $region81: #{tpu_custom_call.1} parent=1 // pred_fallthru
      _
    // Predicated region
    $region82: #{tpu_custom_call.1} parent=1 // pred_check
      _
    $region83: #{tpu_custom_call.1} parent=1 // pred_check_branch
      %163 = sbr.rel (0) target = $region85
    $region84: #{tpu_custom_call.1} parent=1 // pred_region
      %164 = dma.done [#allocation18], 1024
    $region85: #{tpu_custom_call.1} parent=1 // pred_fallthru
      _
    %165 = sfence
    %s167 = sld [smem:[#allocation3]]
    %s168 = scalar_lea.vmem [#allocation7], %s167
    %v169 = vld [vmem:[%s168] sm:$0x1]
    %170 = vst [vmem:[#allocation2] sm:$0x1] %v169
    %s171 = sld [smem:[#allocation3 + $0x1]]
    %s172 = scalar_lea.vmem [#allocation7], %s171
    %v173 = vld [vmem:[%s172] sm:$0x1]
    %174 = vst [vmem:[#allocation2 + $0x1] sm:$0x1] %v173
    %s175 = sld [smem:[#allocation3 + $0x2]]
    %s176 = scalar_lea.vmem [#allocation7], %s175
    %v177 = vld [vmem:[%s176] sm:$0x1]
    %178 = vst [vmem:[#allocation2 + $0x2] sm:$0x1] %v177
    %s179 = sld [smem:[#allocation3 + $0x3]]
    %s180 = scalar_lea.vmem [#allocation7], %s179
    %v181 = vld [vmem:[%s180] sm:$0x1]
    %182 = vst [vmem:[#allocation2 + $0x3] sm:$0x1] %v181
    %s183 = sld [smem:[#allocation3 + $0x4]]
    %s184 = scalar_lea.vmem [#allocation7], %s183
    %v185 = vld [vmem:[%s184] sm:$0x1]
    %186 = vst [vmem:[#allocation2 + $0x4] sm:$0x1] %v185
    %s187 = sld [smem:[#allocation3 + $0x5]]
    %s188 = scalar_lea.vmem [#allocation7], %s187
    %v189 = vld [vmem:[%s188] sm:$0x1]
    %190 = vst [vmem:[#allocation2 + $0x5] sm:$0x1] %v189
    %s191 = sld [smem:[#allocation3 + $0x6]]
    %s192 = scalar_lea.vmem [#allocation7], %s191
    %v193 = vld [vmem:[%s192] sm:$0x1]
    %194 = vst [vmem:[#allocation2 + $0x6] sm:$0x1] %v193
    %s195 = sld [smem:[#allocation3 + $0x7]]
    %s196 = scalar_lea.vmem [#allocation7], %s195
    %v197 = vld [vmem:[%s196] sm:$0x1]
    %198 = vst [vmem:[#allocation2 + $0x7] sm:$0x1] %v197
    %v199 = vld [vmem:[#allocation2] sm:$0xff]
    %v200 = vld [vmem:[#allocation8] sm:$0xff]
    %v201 = vld [vmem:[#allocation10] sm:$0xff]
    %v202 = vld [vmem:[#allocation11] sm:$0xff]
    %v203 = vld [vmem:[#allocation11 + $0x8] sm:$0xff]
    %v204 = vld [vmem:[#allocation11 + $0x10] sm:$0xff]
    %v205 = vld [vmem:[#allocation11 + $0x18] sm:$0xff]
    %v206 = vld [vmem:[#allocation11 + $0x20] sm:$0xff]
    %v207 = vld [vmem:[#allocation11 + $0x28] sm:$0xff]
    %v208 = vld [vmem:[#allocation11 + $0x30] sm:$0xff]
    %v209 = vld [vmem:[#allocation11 + $0x38] sm:$0xff]
    %v210 = vld [vmem:[#allocation11 + $0x40] sm:$0xff]
    %v211 = vld [vmem:[#allocation11 + $0x48] sm:$0xff]
    %v212 = vld [vmem:[#allocation11 + $0x50] sm:$0xff]
    %v213 = vld [vmem:[#allocation11 + $0x58] sm:$0xff]
    %v214 = vld [vmem:[#allocation11 + $0x60] sm:$0xff]
    %v215 = vld [vmem:[#allocation11 + $0x68] sm:$0xff]
    %v216 = vld [vmem:[#allocation11 + $0x70] sm:$0xff]
    %v217 = vld [vmem:[#allocation11 + $0x78] sm:$0xff]
    %v218 = vld [vmem:[#allocation11 + $0x80] sm:$0xff]
    %v219 = vld [vmem:[#allocation11 + $0x88] sm:$0xff]
    %v220 = vld [vmem:[#allocation11 + $0x90] sm:$0xff]
    %v221 = vld [vmem:[#allocation11 + $0x98] sm:$0xff]
    %v222 = vld [vmem:[#allocation11 + $0xa0] sm:$0xff]
    %v223 = vld [vmem:[#allocation11 + $0xa8] sm:$0xff]
    %v224 = vld [vmem:[#allocation11 + $0xb0] sm:$0xff]
    %v225 = vld [vmem:[#allocation11 + $0xb8] sm:$0xff]
    %v226 = vld [vmem:[#allocation11 + $0xc0] sm:$0xff]
    %v227 = vld [vmem:[#allocation11 + $0xc8] sm:$0xff]
    %v228 = vld [vmem:[#allocation11 + $0xd0] sm:$0xff]
    %v229 = vld [vmem:[#allocation11 + $0xd8] sm:$0xff]
    %v230 = vld [vmem:[#allocation11 + $0xe0] sm:$0xff]
    %v231 = vld [vmem:[#allocation11 + $0xe8] sm:$0xff]
    %v232 = vld [vmem:[#allocation11 + $0xf0] sm:$0xff]
    %v233 = vld [vmem:[#allocation11 + $0xf8] sm:$0xff]
    %v234 = vld [vmem:[#allocation13] sm:$0xff]
    %v235 = vld [vmem:[#allocation13 + $0x8] sm:$0xff]
    %v236 = vld [vmem:[#allocation13 + $0x10] sm:$0xff]
    %v237 = vld [vmem:[#allocation13 + $0x18] sm:$0xff]
    %v238 = vld [vmem:[#allocation13 + $0x20] sm:$0xff]
    %v239 = vld [vmem:[#allocation13 + $0x28] sm:$0xff]
    %v240 = vld [vmem:[#allocation13 + $0x30] sm:$0xff]
    %v241 = vld [vmem:[#allocation13 + $0x38] sm:$0xff]
    %v242 = vld [vmem:[#allocation13 + $0x40] sm:$0xff]
    %v243 = vld [vmem:[#allocation13 + $0x48] sm:$0xff]
    %v244 = vld [vmem:[#allocation13 + $0x50] sm:$0xff]
    %v245 = vld [vmem:[#allocation13 + $0x58] sm:$0xff]
    %v246 = vld [vmem:[#allocation13 + $0x60] sm:$0xff]
    %v247 = vld [vmem:[#allocation13 + $0x68] sm:$0xff]
    %v248 = vld [vmem:[#allocation13 + $0x70] sm:$0xff]
    %v249 = vld [vmem:[#allocation13 + $0x78] sm:$0xff]
    %v250 = vld [vmem:[#allocation13 + $0x80] sm:$0xff]
    %v251 = vld [vmem:[#allocation13 + $0x88] sm:$0xff]
    %v252 = vld [vmem:[#allocation13 + $0x90] sm:$0xff]
    %v253 = vld [vmem:[#allocation13 + $0x98] sm:$0xff]
    %v254 = vld [vmem:[#allocation13 + $0xa0] sm:$0xff]
    %v255 = vld [vmem:[#allocation13 + $0xa8] sm:$0xff]
    %v256 = vld [vmem:[#allocation13 + $0xb0] sm:$0xff]
    %v257 = vld [vmem:[#allocation13 + $0xb8] sm:$0xff]
    %v258 = vld [vmem:[#allocation13 + $0xc0] sm:$0xff]
    %v259 = vld [vmem:[#allocation13 + $0xc8] sm:$0xff]
    %v260 = vld [vmem:[#allocation13 + $0xd0] sm:$0xff]
    %v261 = vld [vmem:[#allocation13 + $0xd8] sm:$0xff]
    %v262 = vld [vmem:[#allocation13 + $0xe0] sm:$0xff]
    %v263 = vld [vmem:[#allocation13 + $0xe8] sm:$0xff]
    %v264 = vld [vmem:[#allocation13 + $0xf0] sm:$0xff]
    %v265 = vld [vmem:[#allocation13 + $0xf8] sm:$0xff]
    %v266 = vld [vmem:[%s6] sm:$0xf]
    %v267 = vpack.c.bf16 %v199, %v199
    %v268 = vpack.c.bf16 %v200, %v200
    %v301 = vunpack.c.l.b16 %v234
    %v302 = vunpack.c.h.b16 %v234
    %v303 = vunpack.c.l.b16 %v235
    %v304 = vunpack.c.h.b16 %v235
    %v305 = vunpack.c.l.b16 %v236
    %v306 = vunpack.c.h.b16 %v236
    %v307 = vunpack.c.l.b16 %v237
    %v308 = vunpack.c.h.b16 %v237
    %v309 = vunpack.c.l.b16 %v238
    %v310 = vunpack.c.h.b16 %v238
    %v311 = vunpack.c.l.b16 %v239
    %v312 = vunpack.c.h.b16 %v239
    %v313 = vunpack.c.l.b16 %v240
    %v314 = vunpack.c.h.b16 %v240
    %v315 = vunpack.c.l.b16 %v241
    %v316 = vunpack.c.h.b16 %v241
    %v317 = vunpack.c.l.b16 %v242
    %v318 = vunpack.c.h.b16 %v242
    %v319 = vunpack.c.l.b16 %v243
    %v320 = vunpack.c.h.b16 %v243
    %v321 = vunpack.c.l.b16 %v244
    %v322 = vunpack.c.h.b16 %v244
    %v323 = vunpack.c.l.b16 %v245
    %v324 = vunpack.c.h.b16 %v245
    %v325 = vunpack.c.l.b16 %v246
    %v326 = vunpack.c.h.b16 %v246
    %v327 = vunpack.c.l.b16 %v247
    %v328 = vunpack.c.h.b16 %v247
    %v329 = vunpack.c.l.b16 %v248
    %v330 = vunpack.c.h.b16 %v248
    %v331 = vunpack.c.l.b16 %v249
    %v332 = vunpack.c.h.b16 %v249
    %v333 = vunpack.c.l.b16 %v250
    %v334 = vunpack.c.h.b16 %v250
    %v335 = vunpack.c.l.b16 %v251
    %v336 = vunpack.c.h.b16 %v251
    %v337 = vunpack.c.l.b16 %v252
    %v338 = vunpack.c.h.b16 %v252
    %v339 = vunpack.c.l.b16 %v253
    %v340 = vunpack.c.h.b16 %v253
    %v341 = vunpack.c.l.b16 %v254
    %v342 = vunpack.c.h.b16 %v254
    %v343 = vunpack.c.l.b16 %v255
    %v344 = vunpack.c.h.b16 %v255
    %v345 = vunpack.c.l.b16 %v256
    %v346 = vunpack.c.h.b16 %v256
    %v347 = vunpack.c.l.b16 %v257
    %v348 = vunpack.c.h.b16 %v257
    %v349 = vunpack.c.l.b16 %v258
    %v350 = vunpack.c.h.b16 %v258
    %v351 = vunpack.c.l.b16 %v259
    %v352 = vunpack.c.h.b16 %v259
    %v353 = vunpack.c.l.b16 %v260
    %v354 = vunpack.c.h.b16 %v260
    %v355 = vunpack.c.l.b16 %v261
    %v356 = vunpack.c.h.b16 %v261
    %v357 = vunpack.c.l.b16 %v262
    %v358 = vunpack.c.h.b16 %v262
    %v359 = vunpack.c.l.b16 %v263
    %v360 = vunpack.c.h.b16 %v263
    %v361 = vunpack.c.l.b16 %v264
    %v362 = vunpack.c.h.b16 %v264
    %v363 = vunpack.c.l.b16 %v265
    %v364 = vunpack.c.h.b16 %v265
    %v365 = vpack.c.b16 %v305, %v301
    %v366 = vpack.c.b16 %v306, %v302
    %v367 = vpack.c.b16 %v307, %v303
    %v368 = vpack.c.b16 %v308, %v304
    %v369 = vpack.c.b16 %v313, %v309
    %v370 = vpack.c.b16 %v314, %v310
    %v371 = vpack.c.b16 %v315, %v311
    %v372 = vpack.c.b16 %v316, %v312
    %v373 = vpack.c.b16 %v321, %v317
    %v374 = vpack.c.b16 %v322, %v318
    %v375 = vpack.c.b16 %v323, %v319
    %v376 = vpack.c.b16 %v324, %v320
    %v377 = vpack.c.b16 %v329, %v325
    %v378 = vpack.c.b16 %v330, %v326
    %v379 = vpack.c.b16 %v331, %v327
    %v380 = vpack.c.b16 %v332, %v328
    %v381 = vpack.c.b16 %v337, %v333
    %v382 = vpack.c.b16 %v338, %v334
    %v383 = vpack.c.b16 %v339, %v335
    %v384 = vpack.c.b16 %v340, %v336
    %v385 = vpack.c.b16 %v345, %v341
    %v386 = vpack.c.b16 %v346, %v342
    %v387 = vpack.c.b16 %v347, %v343
    %v388 = vpack.c.b16 %v348, %v344
    %v389 = vpack.c.b16 %v353, %v349
    %v390 = vpack.c.b16 %v354, %v350
    %v391 = vpack.c.b16 %v355, %v351
    %v392 = vpack.c.b16 %v356, %v352
    %v393 = vpack.c.b16 %v361, %v357
    %v394 = vpack.c.b16 %v362, %v358
    %v395 = vpack.c.b16 %v363, %v359
    %v396 = vpack.c.b16 %v364, %v360
    %429 = vmatprep.subr.bf16.mxu0 %v366
    %430 = vmatpush1.bf16.msra.mxu0 %v365
    %431 = vmatprep.subr.bf16.mxu0 %v370
    %432 = vmatpush1.bf16.msra.mxu0 %v369
    %433 = vmatprep.subr.bf16.mxu0 %v374
    %434 = vmatpush1.bf16.msra.mxu0 %v373
    %435 = vmatprep.subr.bf16.mxu0 %v378
    %436 = vmatpush1.bf16.msra.mxu0 %v377
    %437 = vmatprep.subr.bf16.mxu0 %v382
    %438 = vmatpush1.bf16.msra.mxu0 %v381
    %439 = vmatprep.subr.bf16.mxu0 %v386
    %440 = vmatpush1.bf16.msra.mxu0 %v385
    %441 = vmatprep.subr.bf16.mxu0 %v390
    %442 = vmatpush1.bf16.msra.mxu0 %v389
    %443 = vmatprep.subr.bf16.mxu0 %v394
    %444 = vmatpush1.bf16.msra.mxu0 %v393
    %445 = vmatprep.subr.bf16.mxu0 0
    %446 = vmatpush1.bf16.msra.mxu0 0
    %447 = vmatprep.subr.bf16.mxu0 0
    %448 = vmatpush1.bf16.msra.mxu0 0
    %449 = vmatprep.subr.bf16.mxu0 0
    %450 = vmatpush1.bf16.msra.mxu0 0
    %451 = vmatprep.subr.bf16.mxu0 0
    %452 = vmatpush1.bf16.msra.mxu0 0
    %453 = vmatprep.subr.bf16.mxu0 0
    %454 = vmatpush1.bf16.msra.mxu0 0
    %455 = vmatprep.subr.bf16.mxu0 0
    %456 = vmatpush1.bf16.msra.mxu0 0
    %457 = vmatprep.subr.bf16.mxu0 0
    %458 = vmatpush1.bf16.msra.mxu0 0
    %459 = vmatprep.subr.bf16.mxu0 0
    %460 = vmatpush1.bf16.msra.mxu0 0
    %461 = vmatprep.mubr.bf16.mxu0 0
    %462 = vmatmul.mubr.bf16.gmra.mrb[0].mxu0 %v268
    %v463 = vpop.f32.mrb[0].mxu0
    %v464 = vadd.f32 0.0, %v463
    %v465 = vpop.f32.mrb[0].mxu0
    %v466 = vadd.f32 0.0, %v465
    %v467 = vpop.f32.mrb[0].mxu0
    %v468 = vpop.f32.mrb[0].mxu0
    %469 = vdwg.mxu0
    %470 = vmatprep.subr.bf16.mxu0 %v368
    %471 = vmatpush1.bf16.msra.mxu0 %v367
    %472 = vmatprep.subr.bf16.mxu0 %v372
    %473 = vmatpush1.bf16.msra.mxu0 %v371
    %474 = vmatprep.subr.bf16.mxu0 %v376
    %475 = vmatpush1.bf16.msra.mxu0 %v375
    %476 = vmatprep.subr.bf16.mxu0 %v380
    %477 = vmatpush1.bf16.msra.mxu0 %v379
    %478 = vmatprep.subr.bf16.mxu0 %v384
    %479 = vmatpush1.bf16.msra.mxu0 %v383
    %480 = vmatprep.subr.bf16.mxu0 %v388
    %481 = vmatpush1.bf16.msra.mxu0 %v387
    %482 = vmatprep.subr.bf16.mxu0 %v392
    %483 = vmatpush1.bf16.msra.mxu0 %v391
    %484 = vmatprep.subr.bf16.mxu0 %v396
    %485 = vmatpush1.bf16.msra.mxu0 %v395
    %486 = vmatprep.subr.bf16.mxu0 0
    %487 = vmatpush1.bf16.msra.mxu0 0
    %488 = vmatprep.subr.bf16.mxu0 0
    %489 = vmatpush1.bf16.msra.mxu0 0
    %490 = vmatprep.subr.bf16.mxu0 0
    %491 = vmatpush1.bf16.msra.mxu0 0
    %492 = vmatprep.subr.bf16.mxu0 0
    %493 = vmatpush1.bf16.msra.mxu0 0
    %494 = vmatprep.subr.bf16.mxu0 0
    %495 = vmatpush1.bf16.msra.mxu0 0
    %496 = vmatprep.subr.bf16.mxu0 0
    %497 = vmatpush1.bf16.msra.mxu0 0
    %498 = vmatprep.subr.bf16.mxu0 0
    %499 = vmatpush1.bf16.msra.mxu0 0
    %500 = vmatprep.subr.bf16.mxu0 0
    %501 = vmatpush1.bf16.msra.mxu0 0
    %502 = vmatprep.mubr.bf16.mxu0 0
    %503 = vmatmul.mubr.bf16.gmra.mrb[0].mxu0 %v268
    %v504 = vpop.f32.mrb[0].mxu0
    %v505 = vadd.f32 0.0, %v504
    %v506 = vpop.f32.mrb[0].mxu0
    %v507 = vadd.f32 0.0, %v506
    %v508 = vpop.f32.mrb[0].mxu0
    %v509 = vpop.f32.mrb[0].mxu0
    %510 = vdwg.mxu0
    %v543 = vunpack.c.l.b16 %v202
    %v544 = vunpack.c.h.b16 %v202
    %v545 = vunpack.c.l.b16 %v203
    %v546 = vunpack.c.h.b16 %v203
    %v547 = vunpack.c.l.b16 %v204
    %v548 = vunpack.c.h.b16 %v204
    %v549 = vunpack.c.l.b16 %v205
    %v550 = vunpack.c.h.b16 %v205
    %v551 = vunpack.c.l.b16 %v206
    %v552 = vunpack.c.h.b16 %v206
    %v553 = vunpack.c.l.b16 %v207
    %v554 = vunpack.c.h.b16 %v207
    %v555 = vunpack.c.l.b16 %v208
    %v556 = vunpack.c.h.b16 %v208
    %v557 = vunpack.c.l.b16 %v209
    %v558 = vunpack.c.h.b16 %v209
    %v559 = vunpack.c.l.b16 %v210
    %v560 = vunpack.c.h.b16 %v210
    %v561 = vunpack.c.l.b16 %v211
    %v562 = vunpack.c.h.b16 %v211
    %v563 = vunpack.c.l.b16 %v212
    %v564 = vunpack.c.h.b16 %v212
    %v565 = vunpack.c.l.b16 %v213
    %v566 = vunpack.c.h.b16 %v213
    %v567 = vunpack.c.l.b16 %v214
    %v568 = vunpack.c.h.b16 %v214
    %v569 = vunpack.c.l.b16 %v215
    %v570 = vunpack.c.h.b16 %v215
    %v571 = vunpack.c.l.b16 %v216
    %v572 = vunpack.c.h.b16 %v216
    %v573 = vunpack.c.l.b16 %v217
    %v574 = vunpack.c.h.b16 %v217
    %v575 = vunpack.c.l.b16 %v218
    %v576 = vunpack.c.h.b16 %v218
    %v577 = vunpack.c.l.b16 %v219
    %v578 = vunpack.c.h.b16 %v219
    %v579 = vunpack.c.l.b16 %v220
    %v580 = vunpack.c.h.b16 %v220
    %v581 = vunpack.c.l.b16 %v221
    %v582 = vunpack.c.h.b16 %v221
    %v583 = vunpack.c.l.b16 %v222
    %v584 = vunpack.c.h.b16 %v222
    %v585 = vunpack.c.l.b16 %v223
    %v586 = vunpack.c.h.b16 %v223
    %v587 = vunpack.c.l.b16 %v224
    %v588 = vunpack.c.h.b16 %v224
    %v589 = vunpack.c.l.b16 %v225
    %v590 = vunpack.c.h.b16 %v225
    %v591 = vunpack.c.l.b16 %v226
    %v592 = vunpack.c.h.b16 %v226
    %v593 = vunpack.c.l.b16 %v227
    %v594 = vunpack.c.h.b16 %v227
    %v595 = vunpack.c.l.b16 %v228
    %v596 = vunpack.c.h.b16 %v228
    %v597 = vunpack.c.l.b16 %v229
    %v598 = vunpack.c.h.b16 %v229
    %v599 = vunpack.c.l.b16 %v230
    %v600 = vunpack.c.h.b16 %v230
    %v601 = vunpack.c.l.b16 %v231
    %v602 = vunpack.c.h.b16 %v231
    %v603 = vunpack.c.l.b16 %v232
    %v604 = vunpack.c.h.b16 %v232
    %v605 = vunpack.c.l.b16 %v233
    %v606 = vunpack.c.h.b16 %v233
    %v607 = vpack.c.b16 %v547, %v543
    %v608 = vpack.c.b16 %v548, %v544
    %v609 = vpack.c.b16 %v549, %v545
    %v610 = vpack.c.b16 %v550, %v546
    %v611 = vpack.c.b16 %v555, %v551
    %v612 = vpack.c.b16 %v556, %v552
    %v613 = vpack.c.b16 %v557, %v553
    %v614 = vpack.c.b16 %v558, %v554
    %v615 = vpack.c.b16 %v563, %v559
    %v616 = vpack.c.b16 %v564, %v560
    %v617 = vpack.c.b16 %v565, %v561
    %v618 = vpack.c.b16 %v566, %v562
    %v619 = vpack.c.b16 %v571, %v567
    %v620 = vpack.c.b16 %v572, %v568
    %v621 = vpack.c.b16 %v573, %v569
    %v622 = vpack.c.b16 %v574, %v570
    %v623 = vpack.c.b16 %v579, %v575
    %v624 = vpack.c.b16 %v580, %v576
    %v625 = vpack.c.b16 %v581, %v577
    %v626 = vpack.c.b16 %v582, %v578
    %v627 = vpack.c.b16 %v587, %v583
    %v628 = vpack.c.b16 %v588, %v584
    %v629 = vpack.c.b16 %v589, %v585
    %v630 = vpack.c.b16 %v590, %v586
    %v631 = vpack.c.b16 %v595, %v591
    %v632 = vpack.c.b16 %v596, %v592
    %v633 = vpack.c.b16 %v597, %v593
    %v634 = vpack.c.b16 %v598, %v594
    %v635 = vpack.c.b16 %v603, %v599
    %v636 = vpack.c.b16 %v604, %v600
    %v637 = vpack.c.b16 %v605, %v601
    %v638 = vpack.c.b16 %v606, %v602
    %671 = vmatprep.subr.bf16.mxu0 %v608
    %672 = vmatpush1.bf16.msra.mxu0 %v607
    %673 = vmatprep.subr.bf16.mxu0 %v612
    %674 = vmatpush1.bf16.msra.mxu0 %v611
    %675 = vmatprep.subr.bf16.mxu0 %v616
    %676 = vmatpush1.bf16.msra.mxu0 %v615
    %677 = vmatprep.subr.bf16.mxu0 %v620
    %678 = vmatpush1.bf16.msra.mxu0 %v619
    %679 = vmatprep.subr.bf16.mxu0 %v624
    %680 = vmatpush1.bf16.msra.mxu0 %v623
    %681 = vmatprep.subr.bf16.mxu0 %v628
    %682 = vmatpush1.bf16.msra.mxu0 %v627
    %683 = vmatprep.subr.bf16.mxu0 %v632
    %684 = vmatpush1.bf16.msra.mxu0 %v631
    %685 = vmatprep.subr.bf16.mxu0 %v636
    %686 = vmatpush1.bf16.msra.mxu0 %v635
    %687 = vmatprep.subr.bf16.mxu0 0
    %688 = vmatpush1.bf16.msra.mxu0 0
    %689 = vmatprep.subr.bf16.mxu0 0
    %690 = vmatpush1.bf16.msra.mxu0 0
    %691 = vmatprep.subr.bf16.mxu0 0
    %692 = vmatpush1.bf16.msra.mxu0 0
    %693 = vmatprep.subr.bf16.mxu0 0
    %694 = vmatpush1.bf16.msra.mxu0 0
    %695 = vmatprep.subr.bf16.mxu0 0
    %696 = vmatpush1.bf16.msra.mxu0 0
    %697 = vmatprep.subr.bf16.mxu0 0
    %698 = vmatpush1.bf16.msra.mxu0 0
    %699 = vmatprep.subr.bf16.mxu0 0
    %700 = vmatpush1.bf16.msra.mxu0 0
    %701 = vmatprep.subr.bf16.mxu0 0
    %702 = vmatpush1.bf16.msra.mxu0 0
    %703 = vmatprep.mubr.bf16.mxu0 0
    %704 = vmatmul.mubr.bf16.gmra.mrb[0].mxu0 %v267
    %v705 = vpop.f32.mrb[0].mxu0
    %v706 = vadd.f32 %v464, %v705
    %v707 = vpop.f32.mrb[0].mxu0
    %v708 = vadd.f32 %v466, %v707
    %v709 = vpop.f32.mrb[0].mxu0
    %v710 = vpop.f32.mrb[0].mxu0
    %711 = vdwg.mxu0
    %712 = vmatprep.subr.bf16.mxu0 %v610
    %713 = vmatpush1.bf16.msra.mxu0 %v609
    %714 = vmatprep.subr.bf16.mxu0 %v614
    %715 = vmatpush1.bf16.msra.mxu0 %v613
    %716 = vmatprep.subr.bf16.mxu0 %v618
    %717 = vmatpush1.bf16.msra.mxu0 %v617
    %718 = vmatprep.subr.bf16.mxu0 %v622
    %719 = vmatpush1.bf16.msra.mxu0 %v621
    %720 = vmatprep.subr.bf16.mxu0 %v626
    %721 = vmatpush1.bf16.msra.mxu0 %v625
    %722 = vmatprep.subr.bf16.mxu0 %v630
    %723 = vmatpush1.bf16.msra.mxu0 %v629
    %724 = vmatprep.subr.bf16.mxu0 %v634
    %725 = vmatpush1.bf16.msra.mxu0 %v633
    %726 = vmatprep.subr.bf16.mxu0 %v638
    %727 = vmatpush1.bf16.msra.mxu0 %v637
    %728 = vmatprep.subr.bf16.mxu0 0
    %729 = vmatpush1.bf16.msra.mxu0 0
    %730 = vmatprep.subr.bf16.mxu0 0
    %731 = vmatpush1.bf16.msra.mxu0 0
    %732 = vmatprep.subr.bf16.mxu0 0
    %733 = vmatpush1.bf16.msra.mxu0 0
    %734 = vmatprep.subr.bf16.mxu0 0
    %735 = vmatpush1.bf16.msra.mxu0 0
    %736 = vmatprep.subr.bf16.mxu0 0
    %737 = vmatpush1.bf16.msra.mxu0 0
    %738 = vmatprep.subr.bf16.mxu0 0
    %739 = vmatpush1.bf16.msra.mxu0 0
    %740 = vmatprep.subr.bf16.mxu0 0
    %741 = vmatpush1.bf16.msra.mxu0 0
    %742 = vmatprep.subr.bf16.mxu0 0
    %743 = vmatpush1.bf16.msra.mxu0 0
    %744 = vmatprep.mubr.bf16.mxu0 0
    %745 = vmatmul.mubr.bf16.gmra.mrb[0].mxu0 %v267
    %v746 = vpop.f32.mrb[0].mxu0
    %v747 = vadd.f32 %v505, %v746
    %v748 = vpop.f32.mrb[0].mxu0
    %v749 = vadd.f32 %v507, %v748
    %v750 = vpop.f32.mrb[0].mxu0
    %v751 = vpop.f32.mrb[0].mxu0
    %752 = vdwg.mxu0
    %v754 = vlaneseq
    %v755 = vshrl.u32 %v754, 7
    %v756 = vsub.s32 0, %v755
    %v757 = vrot.slane %v266, %v756
    %v758 = vlaneseq
    %v759 = vshrl.u32 %v758, 7
    %v760 = vsub.s32 1, %v759
    %v761 = vrot.slane %v266, %v760
    %v762 = vlaneseq
    %v763 = vshrl.u32 %v762, 7
    %v764 = vsub.s32 2, %v763
    %v765 = vrot.slane %v266, %v764
    %v766 = vlaneseq
    %v767 = vshrl.u32 %v766, 7
    %v768 = vsub.s32 3, %v767
    %v769 = vrot.slane %v266, %v768
    %v774 = vadd.f32 %v706, %v757
    %v775 = vadd.f32 %v708, %v761
    %v776 = vadd.f32 %v747, %v765
    %v777 = vadd.f32 %v749, %v769
    %v778 = vxor.u32 %v774, 2147483648
    %v779 = vxor.u32 %v775, 2147483648
    %v780 = vmul.f32 %v778, 1.442695
    %v781 = vpow.pop %v780
    %v782 = vmul.f32 %v779, 1.442695
    %v783 = vpow.pop %v782
    %v784 = vadd.f32 %v781, 1.0
    %v785 = vadd.f32 %v783, 1.0
    %v786 = vrcp.pop %v784
    %v787 = vmul.f32 1.0, %v786
    %v788 = vrcp.pop %v785
    %v789 = vmul.f32 1.0, %v788
    %v790 = vtanh.pop %v776
    %v791 = vxor.u32 %v777, 2147483648
    %v792 = vmul.f32 %v791, 1.442695
    %v793 = vpow.pop %v792
    %v794 = vadd.f32 %v793, 1.0
    %v795 = vrcp.pop %v794
    %v796 = vmul.f32 1.0, %v795
    %v797 = vmul.f32 %v789, %v201
    %v798 = vmul.f32 %v787, %v790
    %v799 = vadd.f32 %v797, %v798
    %v800 = vtanh.pop %v799
    %v801 = vmul.f32 %v796, %v800
    %802 = vst [vmem:[#allocation20] sm:$0xff] %v801
    %803 = vst [vmem:[#allocation22] sm:$0xff] %v799
    %s804 = scalar_lea.vmem [#allocation8], 8
    %v805 = vld [vmem:[%s804] sm:$0xff]
    %s806 = scalar_lea.vmem [#allocation10], 8
    %v807 = vld [vmem:[%s806] sm:$0xff]
    %v808 = vld [vmem:[#allocation14] sm:$0xff]
    %v809 = vld [vmem:[#allocation14 + $0x8] sm:$0xff]
    %v810 = vld [vmem:[#allocation14 + $0x10] sm:$0xff]
    %v811 = vld [vmem:[#allocation14 + $0x18] sm:$0xff]
    %v812 = vld [vmem:[#allocation14 + $0x20] sm:$0xff]
    %v813 = vld [vmem:[#allocation14 + $0x28] sm:$0xff]
    %v814 = vld [vmem:[#allocation14 + $0x30] sm:$0xff]
    %v815 = vld [vmem:[#allocation14 + $0x38] sm:$0xff]
    %v816 = vld [vmem:[#allocation14 + $0x40] sm:$0xff]
    %v817 = vld [vmem:[#allocation14 + $0x48] sm:$0xff]
    %v818 = vld [vmem:[#allocation14 + $0x50] sm:$0xff]
    %v819 = vld [vmem:[#allocation14 + $0x58] sm:$0xff]
    %v820 = vld [vmem:[#allocation14 + $0x60] sm:$0xff]
    %v821 = vld [vmem:[#allocation14 + $0x68] sm:$0xff]
    %v822 = vld [vmem:[#allocation14 + $0x70] sm:$0xff]
    %v823 = vld [vmem:[#allocation14 + $0x78] sm:$0xff]
    %v824 = vld [vmem:[#allocation14 + $0x80] sm:$0xff]
    %v825 = vld [vmem:[#allocation14 + $0x88] sm:$0xff]
    %v826 = vld [vmem:[#allocation14 + $0x90] sm:$0xff]
    %v827 = vld [vmem:[#allocation14 + $0x98] sm:$0xff]
    %v828 = vld [vmem:[#allocation14 + $0xa0] sm:$0xff]
    %v829 = vld [vmem:[#allocation14 + $0xa8] sm:$0xff]
    %v830 = vld [vmem:[#allocation14 + $0xb0] sm:$0xff]
    %v831 = vld [vmem:[#allocation14 + $0xb8] sm:$0xff]
    %v832 = vld [vmem:[#allocation14 + $0xc0] sm:$0xff]
    %v833 = vld [vmem:[#allocation14 + $0xc8] sm:$0xff]
    %v834 = vld [vmem:[#allocation14 + $0xd0] sm:$0xff]
    %v835 = vld [vmem:[#allocation14 + $0xd8] sm:$0xff]
    %v836 = vld [vmem:[#allocation14 + $0xe0] sm:$0xff]
    %v837 = vld [vmem:[#allocation14 + $0xe8] sm:$0xff]
    %v838 = vld [vmem:[#allocation14 + $0xf0] sm:$0xff]
    %v839 = vld [vmem:[#allocation14 + $0xf8] sm:$0xff]
    %v840 = vld [vmem:[#allocation16] sm:$0xff]
    %v841 = vld [vmem:[#allocation16 + $0x8] sm:$0xff]
    %v842 = vld [vmem:[#allocation16 + $0x10] sm:$0xff]
    %v843 = vld [vmem:[#allocation16 + $0x18] sm:$0xff]
    %v844 = vld [vmem:[#allocation16 + $0x20] sm:$0xff]
    %v845 = vld [vmem:[#allocation16 + $0x28] sm:$0xff]
    %v846 = vld [vmem:[#allocation16 + $0x30] sm:$0xff]
    %v847 = vld [vmem:[#allocation16 + $0x38] sm:$0xff]
    %v848 = vld [vmem:[#allocation16 + $0x40] sm:$0xff]
    %v849 = vld [vmem:[#allocation16 + $0x48] sm:$0xff]
    %v850 = vld [vmem:[#allocation16 + $0x50] sm:$0xff]
    %v851 = vld [vmem:[#allocation16 + $0x58] sm:$0xff]
    %v852 = vld [vmem:[#allocation16 + $0x60] sm:$0xff]
    %v853 = vld [vmem:[#allocation16 + $0x68] sm:$0xff]
    %v854 = vld [vmem:[#allocation16 + $0x70] sm:$0xff]
    %v855 = vld [vmem:[#allocation16 + $0x78] sm:$0xff]
    %v856 = vld [vmem:[#allocation16 + $0x80] sm:$0xff]
    %v857 = vld [vmem:[#allocation16 + $0x88] sm:$0xff]
    %v858 = vld [vmem:[#allocation16 + $0x90] sm:$0xff]
    %v859 = vld [vmem:[#allocation16 + $0x98] sm:$0xff]
    %v860 = vld [vmem:[#allocation16 + $0xa0] sm:$0xff]
    %v861 = vld [vmem:[#allocation16 + $0xa8] sm:$0xff]
    %v862 = vld [vmem:[#allocation16 + $0xb0] sm:$0xff]
    %v863 = vld [vmem:[#allocation16 + $0xb8] sm:$0xff]
    %v864 = vld [vmem:[#allocation16 + $0xc0] sm:$0xff]
    %v865 = vld [vmem:[#allocation16 + $0xc8] sm:$0xff]
    %v866 = vld [vmem:[#allocation16 + $0xd0] sm:$0xff]
    %v867 = vld [vmem:[#allocation16 + $0xd8] sm:$0xff]
    %v868 = vld [vmem:[#allocation16 + $0xe0] sm:$0xff]
    %v869 = vld [vmem:[#allocation16 + $0xe8] sm:$0xff]
    %v870 = vld [vmem:[#allocation16 + $0xf0] sm:$0xff]
    %v871 = vld [vmem:[#allocation16 + $0xf8] sm:$0xff]
    %v872 = vld [vmem:[%s9] sm:$0xf]
    %v873 = vpack.c.bf16 %v801, %v801
    %v874 = vpack.c.bf16 %v805, %v805
    %v907 = vunpack.c.l.b16 %v840
    %v908 = vunpack.c.h.b16 %v840
    %v909 = vunpack.c.l.b16 %v841
    %v910 = vunpack.c.h.b16 %v841
    %v911 = vunpack.c.l.b16 %v842
    %v912 = vunpack.c.h.b16 %v842
    %v913 = vunpack.c.l.b16 %v843
    %v914 = vunpack.c.h.b16 %v843
    %v915 = vunpack.c.l.b16 %v844
    %v916 = vunpack.c.h.b16 %v844
    %v917 = vunpack.c.l.b16 %v845
    %v918 = vunpack.c.h.b16 %v845
    %v919 = vunpack.c.l.b16 %v846
    %v920 = vunpack.c.h.b16 %v846
    %v921 = vunpack.c.l.b16 %v847
    %v922 = vunpack.c.h.b16 %v847
    %v923 = vunpack.c.l.b16 %v848
    %v924 = vunpack.c.h.b16 %v848
    %v925 = vunpack.c.l.b16 %v849
    %v926 = vunpack.c.h.b16 %v849
    %v927 = vunpack.c.l.b16 %v850
    %v928 = vunpack.c.h.b16 %v850
    %v929 = vunpack.c.l.b16 %v851
    %v930 = vunpack.c.h.b16 %v851
    %v931 = vunpack.c.l.b16 %v852
    %v932 = vunpack.c.h.b16 %v852
    %v933 = vunpack.c.l.b16 %v853
    %v934 = vunpack.c.h.b16 %v853
    %v935 = vunpack.c.l.b16 %v854
    %v936 = vunpack.c.h.b16 %v854
    %v937 = vunpack.c.l.b16 %v855
    %v938 = vunpack.c.h.b16 %v855
    %v939 = vunpack.c.l.b16 %v856
    %v940 = vunpack.c.h.b16 %v856
    %v941 = vunpack.c.l.b16 %v857
    %v942 = vunpack.c.h.b16 %v857
    %v943 = vunpack.c.l.b16 %v858
    %v944 = vunpack.c.h.b16 %v858
    %v945 = vunpack.c.l.b16 %v859
    %v946 = vunpack.c.h.b16 %v859
    %v947 = vunpack.c.l.b16 %v860
    %v948 = vunpack.c.h.b16 %v860
    %v949 = vunpack.c.l.b16 %v861
    %v950 = vunpack.c.h.b16 %v861
    %v951 = vunpack.c.l.b16 %v862
    %v952 = vunpack.c.h.b16 %v862
    %v953 = vunpack.c.l.b16 %v863
    %v954 = vunpack.c.h.b16 %v863
    %v955 = vunpack.c.l.b16 %v864
    %v956 = vunpack.c.h.b16 %v864
    %v957 = vunpack.c.l.b16 %v865
    %v958 = vunpack.c.h.b16 %v865
    %v959 = vunpack.c.l.b16 %v866
    %v960 = vunpack.c.h.b16 %v866
    %v961 = vunpack.c.l.b16 %v867
    %v962 = vunpack.c.h.b16 %v867
    %v963 = vunpack.c.l.b16 %v868
    %v964 = vunpack.c.h.b16 %v868
    %v965 = vunpack.c.l.b16 %v869
    %v966 = vunpack.c.h.b16 %v869
    %v967 = vunpack.c.l.b16 %v870
    %v968 = vunpack.c.h.b16 %v870
    %v969 = vunpack.c.l.b16 %v871
    %v970 = vunpack.c.h.b16 %v871
    %v971 = vpack.c.b16 %v911, %v907
    %v972 = vpack.c.b16 %v912, %v908
    %v973 = vpack.c.b16 %v913, %v909
    %v974 = vpack.c.b16 %v914, %v910
    %v975 = vpack.c.b16 %v919, %v915
    %v976 = vpack.c.b16 %v920, %v916
    %v977 = vpack.c.b16 %v921, %v917
    %v978 = vpack.c.b16 %v922, %v918
    %v979 = vpack.c.b16 %v927, %v923
    %v980 = vpack.c.b16 %v928, %v924
    %v981 = vpack.c.b16 %v929, %v925
    %v982 = vpack.c.b16 %v930, %v926
    %v983 = vpack.c.b16 %v935, %v931
    %v984 = vpack.c.b16 %v936, %v932
    %v985 = vpack.c.b16 %v937, %v933
    %v986 = vpack.c.b16 %v938, %v934
    %v987 = vpack.c.b16 %v943, %v939
    %v988 = vpack.c.b16 %v944, %v940
    %v989 = vpack.c.b16 %v945, %v941
    %v990 = vpack.c.b16 %v946, %v942
    %v991 = vpack.c.b16 %v951, %v947
    %v992 = vpack.c.b16 %v952, %v948
    %v993 = vpack.c.b16 %v953, %v949
    %v994 = vpack.c.b16 %v954, %v950
    %v995 = vpack.c.b16 %v959, %v955
    %v996 = vpack.c.b16 %v960, %v956
    %v997 = vpack.c.b16 %v961, %v957
    %v998 = vpack.c.b16 %v962, %v958
    %v999 = vpack.c.b16 %v967, %v963
    %v1000 = vpack.c.b16 %v968, %v964
    %v1001 = vpack.c.b16 %v969, %v965
    %v1002 = vpack.c.b16 %v970, %v966
    %1035 = vmatprep.subr.bf16.mxu0 %v972
    %1036 = vmatpush1.bf16.msra.mxu0 %v971
    %1037 = vmatprep.subr.bf16.mxu0 %v976
    %1038 = vmatpush1.bf16.msra.mxu0 %v975
    %1039 = vmatprep.subr.bf16.mxu0 %v980
    %1040 = vmatpush1.bf16.msra.mxu0 %v979
    %1041 = vmatprep.subr.bf16.mxu0 %v984
    %1042 = vmatpush1.bf16.msra.mxu0 %v983
    %1043 = vmatprep.subr.bf16.mxu0 %v988
    %1044 = vmatpush1.bf16.msra.mxu0 %v987
    %1045 = vmatprep.subr.bf16.mxu0 %v992
    %1046 = vmatpush1.bf16.msra.mxu0 %v991
    %1047 = vmatprep.subr.bf16.mxu0 %v996
    %1048 = vmatpush1.bf16.msra.mxu0 %v995
    %1049 = vmatprep.subr.bf16.mxu0 %v1000
    %1050 = vmatpush1.bf16.msra.mxu0 %v999
    %1051 = vmatprep.subr.bf16.mxu0 0
    %1052 = vmatpush1.bf16.msra.mxu0 0
    %1053 = vmatprep.subr.bf16.mxu0 0
    %1054 = vmatpush1.bf16.msra.mxu0 0
    %1055 = vmatprep.subr.bf16.mxu0 0
    %1056 = vmatpush1.bf16.msra.mxu0 0
    %1057 = vmatprep.subr.bf16.mxu0 0
    %1058 = vmatpush1.bf16.msra.mxu0 0
    %1059 = vmatprep.subr.bf16.mxu0 0
    %1060 = vmatpush1.bf16.msra.mxu0 0
    %1061 = vmatprep.subr.bf16.mxu0 0
    %1062 = vmatpush1.bf16.msra.mxu0 0
    %1063 = vmatprep.subr.bf16.mxu0 0
    %1064 = vmatpush1.bf16.msra.mxu0 0
    %1065 = vmatprep.subr.bf16.mxu0 0
    %1066 = vmatpush1.bf16.msra.mxu0 0
    %1067 = vmatprep.mubr.bf16.mxu0 0
    %1068 = vmatmul.mubr.bf16.gmra.mrb[0].mxu0 %v874
    %v1069 = vpop.f32.mrb[0].mxu0
    %v1070 = vadd.f32 0.0, %v1069
    %v1071 = vpop.f32.mrb[0].mxu0
    %v1072 = vadd.f32 0.0, %v1071
    %v1073 = vpop.f32.mrb[0].mxu0
    %v1074 = vpop.f32.mrb[0].mxu0
    %1075 = vdwg.mxu0
    %1076 = vmatprep.subr.bf16.mxu0 %v974
    %1077 = vmatpush1.bf16.msra.mxu0 %v973
    %1078 = vmatprep.subr.bf16.mxu0 %v978
    %1079 = vmatpush1.bf16.msra.mxu0 %v977
    %1080 = vmatprep.subr.bf16.mxu0 %v982
    %1081 = vmatpush1.bf16.msra.mxu0 %v981
    %1082 = vmatprep.subr.bf16.mxu0 %v986
    %1083 = vmatpush1.bf16.msra.mxu0 %v985
    %1084 = vmatprep.subr.bf16.mxu0 %v990
    %1085 = vmatpush1.bf16.msra.mxu0 %v989
    %1086 = vmatprep.subr.bf16.mxu0 %v994
    %1087 = vmatpush1.bf16.msra.mxu0 %v993
    %1088 = vmatprep.subr.bf16.mxu0 %v998
    %1089 = vmatpush1.bf16.msra.mxu0 %v997
    %1090 = vmatprep.subr.bf16.mxu0 %v1002
    %1091 = vmatpush1.bf16.msra.mxu0 %v1001
    %1092 = vmatprep.subr.bf16.mxu0 0
    %1093 = vmatpush1.bf16.msra.mxu0 0
    %1094 = vmatprep.subr.bf16.mxu0 0
    %1095 = vmatpush1.bf16.msra.mxu0 0
    %1096 = vmatprep.subr.bf16.mxu0 0
    %1097 = vmatpush1.bf16.msra.mxu0 0
    %1098 = vmatprep.subr.bf16.mxu0 0
    %1099 = vmatpush1.bf16.msra.mxu0 0
    %1100 = vmatprep.subr.bf16.mxu0 0
    %1101 = vmatpush1.bf16.msra.mxu0 0
    %1102 = vmatprep.subr.bf16.mxu0 0
    %1103 = vmatpush1.bf16.msra.mxu0 0
    %1104 = vmatprep.subr.bf16.mxu0 0
    %1105 = vmatpush1.bf16.msra.mxu0 0
    %1106 = vmatprep.subr.bf16.mxu0 0
    %1107 = vmatpush1.bf16.msra.mxu0 0
    %1108 = vmatprep.mubr.bf16.mxu0 0
    %1109 = vmatmul.mubr.bf16.gmra.mrb[0].mxu0 %v874
    %v1110 = vpop.f32.mrb[0].mxu0
    %v1111 = vadd.f32 0.0, %v1110
    %v1112 = vpop.f32.mrb[0].mxu0
    %v1113 = vadd.f32 0.0, %v1112
    %v1114 = vpop.f32.mrb[0].mxu0
    %v1115 = vpop.f32.mrb[0].mxu0
    %1116 = vdwg.mxu0
    %v1149 = vunpack.c.l.b16 %v808
    %v1150 = vunpack.c.h.b16 %v808
    %v1151 = vunpack.c.l.b16 %v809
    %v1152 = vunpack.c.h.b16 %v809
    %v1153 = vunpack.c.l.b16 %v810
    %v1154 = vunpack.c.h.b16 %v810
    %v1155 = vunpack.c.l.b16 %v811
    %v1156 = vunpack.c.h.b16 %v811
    %v1157 = vunpack.c.l.b16 %v812
    %v1158 = vunpack.c.h.b16 %v812
    %v1159 = vunpack.c.l.b16 %v813
    %v1160 = vunpack.c.h.b16 %v813
    %v1161 = vunpack.c.l.b16 %v814
    %v1162 = vunpack.c.h.b16 %v814
    %v1163 = vunpack.c.l.b16 %v815
    %v1164 = vunpack.c.h.b16 %v815
    %v1165 = vunpack.c.l.b16 %v816
    %v1166 = vunpack.c.h.b16 %v816
    %v1167 = vunpack.c.l.b16 %v817
    %v1168 = vunpack.c.h.b16 %v817
    %v1169 = vunpack.c.l.b16 %v818
    %v1170 = vunpack.c.h.b16 %v818
    %v1171 = vunpack.c.l.b16 %v819
    %v1172 = vunpack.c.h.b16 %v819
    %v1173 = vunpack.c.l.b16 %v820
    %v1174 = vunpack.c.h.b16 %v820
    %v1175 = vunpack.c.l.b16 %v821
    %v1176 = vunpack.c.h.b16 %v821
    %v1177 = vunpack.c.l.b16 %v822
    %v1178 = vunpack.c.h.b16 %v822
    %v1179 = vunpack.c.l.b16 %v823
    %v1180 = vunpack.c.h.b16 %v823
    %v1181 = vunpack.c.l.b16 %v824
    %v1182 = vunpack.c.h.b16 %v824
    %v1183 = vunpack.c.l.b16 %v825
    %v1184 = vunpack.c.h.b16 %v825
    %v1185 = vunpack.c.l.b16 %v826
    %v1186 = vunpack.c.h.b16 %v826
    %v1187 = vunpack.c.l.b16 %v827
    %v1188 = vunpack.c.h.b16 %v827
    %v1189 = vunpack.c.l.b16 %v828
    %v1190 = vunpack.c.h.b16 %v828
    %v1191 = vunpack.c.l.b16 %v829
    %v1192 = vunpack.c.h.b16 %v829
    %v1193 = vunpack.c.l.b16 %v830
    %v1194 = vunpack.c.h.b16 %v830
    %v1195 = vunpack.c.l.b16 %v831
    %v1196 = vunpack.c.h.b16 %v831
    %v1197 = vunpack.c.l.b16 %v832
    %v1198 = vunpack.c.h.b16 %v832
    %v1199 = vunpack.c.l.b16 %v833
    %v1200 = vunpack.c.h.b16 %v833
    %v1201 = vunpack.c.l.b16 %v834
    %v1202 = vunpack.c.h.b16 %v834
    %v1203 = vunpack.c.l.b16 %v835
    %v1204 = vunpack.c.h.b16 %v835
    %v1205 = vunpack.c.l.b16 %v836
    %v1206 = vunpack.c.h.b16 %v836
    %v1207 = vunpack.c.l.b16 %v837
    %v1208 = vunpack.c.h.b16 %v837
    %v1209 = vunpack.c.l.b16 %v838
    %v1210 = vunpack.c.h.b16 %v838
    %v1211 = vunpack.c.l.b16 %v839
    %v1212 = vunpack.c.h.b16 %v839
    %v1213 = vpack.c.b16 %v1153, %v1149
    %v1214 = vpack.c.b16 %v1154, %v1150
    %v1215 = vpack.c.b16 %v1155, %v1151
    %v1216 = vpack.c.b16 %v1156, %v1152
    %v1217 = vpack.c.b16 %v1161, %v1157
    %v1218 = vpack.c.b16 %v1162, %v1158
    %v1219 = vpack.c.b16 %v1163, %v1159
    %v1220 = vpack.c.b16 %v1164, %v1160
    %v1221 = vpack.c.b16 %v1169, %v1165
    %v1222 = vpack.c.b16 %v1170, %v1166
    %v1223 = vpack.c.b16 %v1171, %v1167
    %v1224 = vpack.c.b16 %v1172, %v1168
    %v1225 = vpack.c.b16 %v1177, %v1173
    %v1226 = vpack.c.b16 %v1178, %v1174
    %v1227 = vpack.c.b16 %v1179, %v1175
    %v1228 = vpack.c.b16 %v1180, %v1176
    %v1229 = vpack.c.b16 %v1185, %v1181
    %v1230 = vpack.c.b16 %v1186, %v1182
    %v1231 = vpack.c.b16 %v1187, %v1183
    %v1232 = vpack.c.b16 %v1188, %v1184
    %v1233 = vpack.c.b16 %v1193, %v1189
    %v1234 = vpack.c.b16 %v1194, %v1190
    %v1235 = vpack.c.b16 %v1195, %v1191
    %v1236 = vpack.c.b16 %v1196, %v1192
    %v1237 = vpack.c.b16 %v1201, %v1197
    %v1238 = vpack.c.b16 %v1202, %v1198
    %v1239 = vpack.c.b16 %v1203, %v1199
    %v1240 = vpack.c.b16 %v1204, %v1200
    %v1241 = vpack.c.b16 %v1209, %v1205
    %v1242 = vpack.c.b16 %v1210, %v1206
    %v1243 = vpack.c.b16 %v1211, %v1207
    %v1244 = vpack.c.b16 %v1212, %v1208
    %1277 = vmatprep.subr.bf16.mxu0 %v1214
    %1278 = vmatpush1.bf16.msra.mxu0 %v1213
    %1279 = vmatprep.subr.bf16.mxu0 %v1218
    %1280 = vmatpush1.bf16.msra.mxu0 %v1217
    %1281 = vmatprep.subr.bf16.mxu0 %v1222
    %1282 = vmatpush1.bf16.msra.mxu0 %v1221
    %1283 = vmatprep.subr.bf16.mxu0 %v1226
    %1284 = vmatpush1.bf16.msra.mxu0 %v1225
    %1285 = vmatprep.subr.bf16.mxu0 %v1230
    %1286 = vmatpush1.bf16.msra.mxu0 %v1229
    %1287 = vmatprep.subr.bf16.mxu0 %v1234
    %1288 = vmatpush1.bf16.msra.mxu0 %v1233
    %1289 = vmatprep.subr.bf16.mxu0 %v1238
    %1290 = vmatpush1.bf16.msra.mxu0 %v1237
    %1291 = vmatprep.subr.bf16.mxu0 %v1242
    %1292 = vmatpush1.bf16.msra.mxu0 %v1241
    %1293 = vmatprep.subr.bf16.mxu0 0
    %1294 = vmatpush1.bf16.msra.mxu0 0
    %1295 = vmatprep.subr.bf16.mxu0 0
    %1296 = vmatpush1.bf16.msra.mxu0 0
    %1297 = vmatprep.subr.bf16.mxu0 0
    %1298 = vmatpush1.bf16.msra.mxu0 0
    %1299 = vmatprep.subr.bf16.mxu0 0
    %1300 = vmatpush1.bf16.msra.mxu0 0
    %1301 = vmatprep.subr.bf16.mxu0 0
    %1302 = vmatpush1.bf16.msra.mxu0 0
    %1303 = vmatprep.subr.bf16.mxu0 0
    %1304 = vmatpush1.bf16.msra.mxu0 0
    %1305 = vmatprep.subr.bf16.mxu0 0
    %1306 = vmatpush1.bf16.msra.mxu0 0
    %1307 = vmatprep.subr.bf16.mxu0 0
    %1308 = vmatpush1.bf16.msra.mxu0 0
    %1309 = vmatprep.mubr.bf16.mxu0 0
    %1310 = vmatmul.mubr.bf16.gmra.mrb[0].mxu0 %v873
    %v1311 = vpop.f32.mrb[0].mxu0
    %v1312 = vadd.f32 %v1070, %v1311
    %v1313 = vpop.f32.mrb[0].mxu0
    %v1314 = vadd.f32 %v1072, %v1313
    %v1315 = vpop.f32.mrb[0].mxu0
    %v1316 = vpop.f32.mrb[0].mxu0
    %1317 = vdwg.mxu0
    %1318 = vmatprep.subr.bf16.mxu0 %v1216
    %1319 = vmatpush1.bf16.msra.mxu0 %v1215
    %1320 = vmatprep.subr.bf16.mxu0 %v1220
    %1321 = vmatpush1.bf16.msra.mxu0 %v1219
    %1322 = vmatprep.subr.bf16.mxu0 %v1224
    %1323 = vmatpush1.bf16.msra.mxu0 %v1223
    %1324 = vmatprep.subr.bf16.mxu0 %v1228
    %1325 = vmatpush1.bf16.msra.mxu0 %v1227
    %1326 = vmatprep.subr.bf16.mxu0 %v1232
    %1327 = vmatpush1.bf16.msra.mxu0 %v1231
    %1328 = vmatprep.subr.bf16.mxu0 %v1236
    %1329 = vmatpush1.bf16.msra.mxu0 %v1235
    %1330 = vmatprep.subr.bf16.mxu0 %v1240
    %1331 = vmatpush1.bf16.msra.mxu0 %v1239
    %1332 = vmatprep.subr.bf16.mxu0 %v1244
    %1333 = vmatpush1.bf16.msra.mxu0 %v1243
    %1334 = vmatprep.subr.bf16.mxu0 0
    %1335 = vmatpush1.bf16.msra.mxu0 0
    %1336 = vmatprep.subr.bf16.mxu0 0
    %1337 = vmatpush1.bf16.msra.mxu0 0
    %1338 = vmatprep.subr.bf16.mxu0 0
    %1339 = vmatpush1.bf16.msra.mxu0 0
    %1340 = vmatprep.subr.bf16.mxu0 0
    %1341 = vmatpush1.bf16.msra.mxu0 0
    %1342 = vmatprep.subr.bf16.mxu0 0
    %1343 = vmatpush1.bf16.msra.mxu0 0
    %1344 = vmatprep.subr.bf16.mxu0 0
    %1345 = vmatpush1.bf16.msra.mxu0 0
    %1346 = vmatprep.subr.bf16.mxu0 0
    %1347 = vmatpush1.bf16.msra.mxu0 0
    %1348 = vmatprep.subr.bf16.mxu0 0
    %1349 = vmatpush1.bf16.msra.mxu0 0
    %1350 = vmatprep.mubr.bf16.mxu0 0
    %1351 = vmatmul.mubr.bf16.gmra.mrb[0].mxu0 %v873
    %v1352 = vpop.f32.mrb[0].mxu0
    %v1353 = vadd.f32 %v1111, %v1352
    %v1354 = vpop.f32.mrb[0].mxu0
    %v1355 = vadd.f32 %v1113, %v1354
    %v1356 = vpop.f32.mrb[0].mxu0
    %v1357 = vpop.f32.mrb[0].mxu0
    %1358 = vdwg.mxu0
    %v1360 = vlaneseq
    %v1361 = vshrl.u32 %v1360, 7
    %v1362 = vsub.s32 0, %v1361
    %v1363 = vrot.slane %v872, %v1362
    %v1364 = vlaneseq
    %v1365 = vshrl.u32 %v1364, 7
    %v1366 = vsub.s32 1, %v1365
    %v1367 = vrot.slane %v872, %v1366
    %v1368 = vlaneseq
    %v1369 = vshrl.u32 %v1368, 7
    %v1370 = vsub.s32 2, %v1369
    %v1371 = vrot.slane %v872, %v1370
    %v1372 = vlaneseq
    %v1373 = vshrl.u32 %v1372, 7
    %v1374 = vsub.s32 3, %v1373
    %v1375 = vrot.slane %v872, %v1374
    %v1380 = vadd.f32 %v1312, %v1363
    %v1381 = vadd.f32 %v1314, %v1367
    %v1382 = vadd.f32 %v1353, %v1371
    %v1383 = vadd.f32 %v1355, %v1375
    %v1384 = vxor.u32 %v1380, 2147483648
    %v1385 = vxor.u32 %v1381, 2147483648
    %v1386 = vmul.f32 %v1384, 1.442695
    %v1387 = vpow.pop %v1386
    %v1388 = vmul.f32 %v1385, 1.442695
    %v1389 = vpow.pop %v1388
    %v1390 = vadd.f32 %v1387, 1.0
    %v1391 = vadd.f32 %v1389, 1.0
    %v1392 = vrcp.pop %v1390
    %v1393 = vmul.f32 1.0, %v1392
    %v1394 = vrcp.pop %v1391
    %v1395 = vmul.f32 1.0, %v1394
    %v1396 = vtanh.pop %v1382
    %v1397 = vxor.u32 %v1383, 2147483648
    %v1398 = vmul.f32 %v1397, 1.442695
    %v1399 = vpow.pop %v1398
    %v1400 = vadd.f32 %v1399, 1.0
    %v1401 = vrcp.pop %v1400
    %v1402 = vmul.f32 1.0, %v1401
    %v1403 = vmul.f32 %v1395, %v807
    %v1404 = vmul.f32 %v1393, %v1396
    %v1405 = vadd.f32 %v1403, %v1404
    %v1406 = vtanh.pop %v1405
    %v1407 = vmul.f32 %v1402, %v1406
    %s1408 = scalar_lea.vmem [#allocation20], 8
    %1409 = vst [vmem:[%s1408] sm:$0xff] %v1407
    %s1410 = scalar_lea.vmem [#allocation22], 8
    %1411 = vst [vmem:[%s1410] sm:$0xff] %v1405
    %v1412 = vpack.c.bf16 %v1407, %v1407
    %v1413 = vld [vmem:[#allocation17] sm:$0xf]
    %v1414 = vld [vmem:[#allocation17 + $0x4] sm:$0xf]
    %v1415 = vld [vmem:[#allocation17 + $0x8] sm:$0xf]
    %v1416 = vld [vmem:[#allocation17 + $0xc] sm:$0xf]
    %v1417 = vld [vmem:[#allocation17 + $0x10] sm:$0xf]
    %v1418 = vld [vmem:[#allocation17 + $0x14] sm:$0xf]
    %v1419 = vld [vmem:[#allocation17 + $0x18] sm:$0xf]
    %v1420 = vld [vmem:[#allocation17 + $0x1c] sm:$0xf]
    %v1421 = vld [vmem:[#allocation17 + $0x20] sm:$0xf]
    %v1422 = vld [vmem:[#allocation17 + $0x24] sm:$0xf]
    %v1423 = vld [vmem:[#allocation17 + $0x28] sm:$0xf]
    %v1424 = vld [vmem:[#allocation17 + $0x2c] sm:$0xf]
    %v1425 = vld [vmem:[#allocation17 + $0x30] sm:$0xf]
    %v1426 = vld [vmem:[#allocation17 + $0x34] sm:$0xf]
    %v1427 = vld [vmem:[#allocation17 + $0x38] sm:$0xf]
    %v1428 = vld [vmem:[#allocation17 + $0x3c] sm:$0xf]
    %v1429 = vld [vmem:[%s11] sm:$0x1]
    %v1431 = vlaneseq
    %v1432 = vshrl.u32 %v1431, 7
    %v1433 = vsub.s32 0, %v1432
    %v1434 = vrot.slane %v1429, %v1433
    %v1452 = vunpack.c.l.b16 %v1413
    %v1453 = vunpack.c.l.b16 %v1414
    %v1454 = vunpack.c.l.b16 %v1415
    %v1455 = vunpack.c.l.b16 %v1416
    %v1456 = vunpack.c.l.b16 %v1417
    %v1457 = vunpack.c.l.b16 %v1418
    %v1458 = vunpack.c.l.b16 %v1419
    %v1459 = vunpack.c.l.b16 %v1420
    %v1460 = vunpack.c.l.b16 %v1421
    %v1461 = vunpack.c.l.b16 %v1422
    %v1462 = vunpack.c.l.b16 %v1423
    %v1463 = vunpack.c.l.b16 %v1424
    %v1464 = vunpack.c.l.b16 %v1425
    %v1465 = vunpack.c.l.b16 %v1426
    %v1466 = vunpack.c.l.b16 %v1427
    %v1467 = vunpack.c.l.b16 %v1428
    %v1468 = vpack.c.b16 %v1453, %v1452
    %v1469 = vpack.c.b16 %v1455, %v1454
    %v1470 = vpack.c.b16 %v1457, %v1456
    %v1471 = vpack.c.b16 %v1459, %v1458
    %v1472 = vpack.c.b16 %v1461, %v1460
    %v1473 = vpack.c.b16 %v1463, %v1462
    %v1474 = vpack.c.b16 %v1465, %v1464
    %v1475 = vpack.c.b16 %v1467, %v1466
    %1484 = vmatprep.subr.bf16.mxu0 0
    %1485 = vmatpush1.bf16.msra.mxu0 %v1468
    %1486 = vmatprep.subr.bf16.mxu0 0
    %1487 = vmatpush1.bf16.msra.mxu0 %v1469
    %1488 = vmatprep.subr.bf16.mxu0 0
    %1489 = vmatpush1.bf16.msra.mxu0 %v1470
    %1490 = vmatprep.subr.bf16.mxu0 0
    %1491 = vmatpush1.bf16.msra.mxu0 %v1471
    %1492 = vmatprep.subr.bf16.mxu0 0
    %1493 = vmatpush1.bf16.msra.mxu0 %v1472
    %1494 = vmatprep.subr.bf16.mxu0 0
    %1495 = vmatpush1.bf16.msra.mxu0 %v1473
    %1496 = vmatprep.subr.bf16.mxu0 0
    %1497 = vmatpush1.bf16.msra.mxu0 %v1474
    %1498 = vmatprep.subr.bf16.mxu0 0
    %1499 = vmatpush1.bf16.msra.mxu0 %v1475
    %1500 = vmatprep.subr.bf16.mxu0 0
    %1501 = vmatpush1.bf16.msra.mxu0 0
    %1502 = vmatprep.subr.bf16.mxu0 0
    %1503 = vmatpush1.bf16.msra.mxu0 0
    %1504 = vmatprep.subr.bf16.mxu0 0
    %1505 = vmatpush1.bf16.msra.mxu0 0
    %1506 = vmatprep.subr.bf16.mxu0 0
    %1507 = vmatpush1.bf16.msra.mxu0 0
    %1508 = vmatprep.subr.bf16.mxu0 0
    %1509 = vmatpush1.bf16.msra.mxu0 0
    %1510 = vmatprep.subr.bf16.mxu0 0
    %1511 = vmatpush1.bf16.msra.mxu0 0
    %1512 = vmatprep.subr.bf16.mxu0 0
    %1513 = vmatpush1.bf16.msra.mxu0 0
    %1514 = vmatprep.subr.bf16.mxu0 0
    %1515 = vmatpush1.bf16.msra.mxu0 0
    %1516 = vmatprep.mubr.bf16.mxu0 0
    %1517 = vmatmul.mubr.bf16.gmra.mrb[0].mxu0 %v1412
    %v1518 = vpop.f32.mrb[0].mxu0
    %v1519 = vadd.f32 %v1434, %v1518
    %v1520 = vpop.f32.mrb[0].mxu0
    %v1521 = vpop.f32.mrb[0].mxu0
    %v1522 = vpop.f32.mrb[0].mxu0
    %1523 = vdwg.mxu0
    %1524 = vst [vmem:[#allocation19] sm:$0xff] %v1519
    // Predicated region
    $region86: #{tpu_custom_call.1} parent=1 // pred_check
      _
    $region87: #{tpu_custom_call.1} parent=1 // pred_check_branch
      %1526 = sbr.rel (0) target = $region89
    $region88: #{tpu_custom_call.1} parent=1 // pred_region
      %s1528 = ssub.s32 128, 128
      %1529 = vsyncadd [#allocation5], %s1528
      %s1531 = sshll.u32 [#allocation19], 4
      %s1532 = int_to_ptr.vmem [resolvable:$true] %s1531
      %1534 = dma.vmem_to_hbm [thread:$0]  %s1532, 128, %s12, [#allocation5]
    $region89: #{tpu_custom_call.1} parent=1 // pred_fallthru
      _
    // Predicated region
    $region90: #{tpu_custom_call.1} parent=1 // pred_check
      _
    $region91: #{tpu_custom_call.1} parent=1 // pred_check_branch
      %1536 = sbr.rel (0) target = $region93
    $region92: #{tpu_custom_call.1} parent=1 // pred_region
      %s1538 = ssub.s32 256, 256
      %1539 = vsyncadd [#allocation21], %s1538
      %s1540 = sshll.u32 [#allocation20], 4
      %s1541 = int_to_ptr.vmem [resolvable:$true] %s1540
      %1546 = dma.vmem_to_hbm [thread:$0]  %s1541, 256, %s13, [#allocation21], 128, 128, 8
    $region93: #{tpu_custom_call.1} parent=1 // pred_fallthru
      _
    // Predicated region
    $region94: #{tpu_custom_call.1} parent=1 // pred_check
      _
    $region95: #{tpu_custom_call.1} parent=1 // pred_check_branch
      %1548 = sbr.rel (0) target = $region97
    $region96: #{tpu_custom_call.1} parent=1 // pred_region
      %s1550 = ssub.s32 256, 256
      %1551 = vsyncadd [#allocation21], %s1550
      %s1552 = sshll.u32 [#allocation22], 4
      %s1553 = int_to_ptr.vmem [resolvable:$true] %s1552
      %1558 = dma.vmem_to_hbm [thread:$0]  %s1553, 256, %s14, [#allocation21], 128, 128, 8
    $region97: #{tpu_custom_call.1} parent=1 // pred_fallthru
      _
    // Predicated region
    $region98: #{tpu_custom_call.1} parent=1 // pred_check
      _
    $region99: #{tpu_custom_call.1} parent=1 // pred_check_branch
      %1560 = sbr.rel (0) target = $region101
    $region100: #{tpu_custom_call.1} parent=1 // pred_region
      %1561 = dma.done [#allocation5], 128
    $region101: #{tpu_custom_call.1} parent=1 // pred_fallthru
      _
    // Predicated region
    $region102: #{tpu_custom_call.1} parent=1 // pred_check
      _
    $region103: #{tpu_custom_call.1} parent=1 // pred_check_branch
      %1563 = sbr.rel (0) target = $region105
    $region104: #{tpu_custom_call.1} parent=1 // pred_region
      %1564 = dma.done [#allocation21], 256
    $region105: #{tpu_custom_call.1} parent=1 // pred_fallthru
      _
    // Predicated region
    $region106: #{tpu_custom_call.1} parent=1 // pred_check
      _
    $region107: #{tpu_custom_call.1} parent=1 // pred_check_branch
      %1566 = sbr.rel (0) target = $region109
    $region108: #{tpu_custom_call.1} parent=1 // pred_region
      %1567 = dma.done [#allocation21], 256
    $region109: #{tpu_custom_call.1} parent=1 // pred_fallthru
      _
    %1568 = vsyncpa [#allocation4], 1
    %1569 = vsyncpa [#allocation9], 1
    %1570 = vsyncpa [#allocation12], 1
    %1571 = vsyncpa [#allocation15], 1
    %1572 = vsyncpa [#allocation18], 1
    %1573 = vsyncpa [#allocation5], 1
    %1574 = vsyncpa [#allocation21], 1
    %1575 = vsyncpa [#allocation6], 1

</llo_original>
